<compile_context>
chip_gen: v5e
topology: v5e:2x2
jax: 0.10.0
libtpu: 0.0.40
codegen_flags: <defaults>
</compile_context>

<pallas_src>
import functools

import jax
import jax.numpy as jnp
from jax.experimental import pallas as pl
from jax.experimental.pallas import tpu as pltpu


# ----------------------------------------------------------------------------
# Pallas kernel: both LSTM directions, one layer.  Grid = (2, T_pad // TC).
# Pre-gates (x @ W_ih^T + b) are precomputed outside; only h @ W_hh^T is in-loop.
# ----------------------------------------------------------------------------
def _bilstm_chunk_kernel(len_ref, pg_ref, whh_ref, out_ref, h_scr, c_scr, *, tc, hidden):
    d = pl.program_id(0)          # 0 = forward, 1 = backward
    tb = pl.program_id(1)         # time-block counter (processing order)
    nb = pl.num_programs(1)

    @pl.when(tb == 0)
    def _init():
        h_scr[...] = jnp.zeros_like(h_scr)
        c_scr[...] = jnp.zeros_like(c_scr)

    lens = len_ref[...]           # (B, 1) int32, resident across the grid
    whh = whh_ref[...]            # (H, 4H), resident per direction
    # Global time index of row 0 of the time block this grid step received
    # (forward: block tb; backward: block nb - 1 - tb -- reversal is in the index_map).
    base = (tb + d * (nb - 1 - 2 * tb)) * tc

    def step(i, carry):
        # Forward walks rows 0..tc-1, backward walks tc-1..0 within the block.
        row = i + d * (tc - 1 - 2 * i)
        t_glob = base + row

        h = h_scr[...]
        c = c_scr[...]
        gates = pg_ref[row] + jnp.dot(h, whh, preferred_element_type=jnp.float32)

        i_g = jax.nn.sigmoid(gates[:, 0 * hidden:1 * hidden])
        f_g = jax.nn.sigmoid(gates[:, 1 * hidden:2 * hidden])
        g_g = jnp.tanh(gates[:, 2 * hidden:3 * hidden])
        o_g = jax.nn.sigmoid(gates[:, 3 * hidden:4 * hidden])

        c_new = f_g * c + i_g * g_g
        h_new = o_g * jnp.tanh(c_new)

        # Length mask computed in-kernel; padded steps keep previous (initial) state.
        m = (t_glob < lens).astype(jnp.float32)       # (B, 1)
        h_scr[...] = m * h_new + (1.0 - m) * h
        c_scr[...] = m * c_new + (1.0 - m) * c
        # pad_packed_sequence pads outputs with zeros.
        out_ref[row] = m * h_new
        return carry

    jax.lax.fori_loop(0, tc, step, 0, unroll=True)


def _bilstm_layer(pregates, whh_stacked, lengths_b1, tc):
    """Run both directions of one bidirectional LSTM layer.

    pregates:    (2, T_pad, B, 4H) float32   x @ W_ih^T + b_ih + b_hh, per direction
    whh_stacked: (2, H, 4H)        float32   W_hh^T, per direction
    lengths_b1:  (B, 1)            int32
    returns      (2, T_pad, B, H)  float32
    """
    _, t_pad, b, h4 = pregates.shape
    h = h4 // 4
    nb = t_pad // tc

    def t_block(d, tb):
        # forward (d=0): tb ; backward (d=1): nb - 1 - tb  (reverse time, no [::-1])
        return tb + d * (nb - 1 - 2 * tb)

    kernel = functools.partial(_bilstm_chunk_kernel, tc=tc, hidden=h)
    return pl.pallas_call(
        kernel,
        out_shape=jax.ShapeDtypeStruct((2, t_pad, b, h), jnp.float32),
        grid_spec=pltpu.PrefetchScalarGridSpec(
            num_scalar_prefetch=0,
            grid=(2, nb),
            in_specs=[
                pl.BlockSpec((b, 1), lambda d, tb: (0, 0)),                 # lengths
                pl.BlockSpec((None, tc, b, h4),
                             lambda d, tb: (d, t_block(d, tb), 0, 0)),      # pre-gates
                pl.BlockSpec((None, h, h4), lambda d, tb: (d, 0, 0)),       # W_hh^T
            ],
            out_specs=pl.BlockSpec((None, tc, b, h),
                                   lambda d, tb: (d, t_block(d, tb), 0, 0)),
            scratch_shapes=[
                pltpu.VMEM((b, h), jnp.float32),   # h state
                pltpu.VMEM((b, h), jnp.float32),   # c state
            ],
        ),
        compiler_params=pltpu.CompilerParams(
            # direction axis is independent (splits across v7x TCs); time is recurrent.
            dimension_semantics=("parallel", "arbitrary")),
    )(lengths_b1, pregates, whh_stacked)


# ----------------------------------------------------------------------------
# RNNEncoder forward (inference semantics)
# ----------------------------------------------------------------------------
@functools.partial(jax.jit, static_argnames=("num_layers", "hidden_size", "tc"))
def rnn_encoder_forward(x, lengths, params, *, num_layers, hidden_size, tc):
    """x: (B, T, input_size) float32, lengths: (B,) int32 -> (B, T, 2*hidden)."""
    b, t, _ = x.shape
    h = hidden_size
    t_pad = ((t + tc - 1) // tc) * tc

    x_tbd = jnp.transpose(x, (1, 0, 2)).astype(jnp.float32)          # (T, B, D)
    if t_pad != t:
        x_tbd = jnp.pad(x_tbd, ((0, t_pad - t), (0, 0), (0, 0)))
    lengths_b1 = lengths.reshape(b, 1).astype(jnp.int32)

    inp = x_tbd   # layer 0: (T_pad, B, D); deeper layers: (2, T_pad, B, H)
    for layer in range(num_layers):
        pgs = []
        for direction in range(2):
            w_ih, _, b_ih, b_hh = params[(layer, direction)]
            wih_t = w_ih.T.astype(jnp.float32)                       # (D_in, 4H)
            bias = (b_ih + b_hh).astype(jnp.float32)                 # (4H,)
            if inp.ndim == 3:
                # One big (T*B, D) x (D, 4H) matmul -- full MXU utilization.
                pg = jnp.einsum('tbd,dg->tbg', inp, wih_t) + bias
            else:
                # Previous layer output is kept as (2, T, B, H): contract each
                # direction half of W_ih against the matching half (no concat in HBM).
                pg = jnp.einsum('ztbh,zhg->tbg', inp,
                                wih_t.reshape(2, h, 4 * h)) + bias
            pgs.append(pg)
        pregates = jnp.stack(pgs, axis=0)                            # (2, T_pad, B, 4H)
        whh = jnp.stack([params[(layer, dd)][1].T for dd in range(2)],
                        axis=0).astype(jnp.float32)                  # (2, H, 4H)
        inp = _bilstm_layer(pregates, whh, lengths_b1, tc)
        # inter-layer LSTM dropout: identity in eval mode.

    # (2, T_pad, B, H) -> (B, T, 2H) : [fwd, bwd] concatenated on the feature axis.
    out = jnp.transpose(inp, (2, 1, 0, 3)).reshape(b, t_pad, 2 * h)[:, :t]
    # F.dropout(..., training=False): identity.
    return out


# ----------------------------------------------------------------------------
# Pure-JAX reference (lax.scan) for correctness check
# ----------------------------------------------------------------------------
def _lstm_direction_ref(x_tbd, mask_tb1, w_ih, w_hh, b_ih, b_hh):
    T, B, _ = x_tbd.shape
    H = w_hh.shape[1]

    def step(carry, inp):
        h, c = carry
        x_t, m_t = inp
        gates = x_t @ w_ih.T + h @ w_hh.T + b_ih + b_hh
        i_g = jax.nn.sigmoid(gates[:, :H])
        f_g = jax.nn.sigmoid(gates[:, H:2 * H])
        g_g = jnp.tanh(gates[:, 2 * H:3 * H])
        o_g = jax.nn.sigmoid(gates[:, 3 * H:])
        c_new = f_g * c + i_g * g_g
        h_new = o_g * jnp.tanh(c_new)
        h = m_t * h_new + (1.0 - m_t) * h
        c = m_t * c_new + (1.0 - m_t) * c
        return (h, c), m_t * h_new

    init = (jnp.zeros((B, H), jnp.float32), jnp.zeros((B, H), jnp.float32))
    _, outs = jax.lax.scan(step, init, (x_tbd, mask_tb1))
    return outs


def rnn_encoder_ref(x, lengths, params, num_layers):
    B, T, _ = x.shape
    mask = (jnp.arange(T)[None, :] < lengths[:, None]).astype(jnp.float32)
    mask_tb1 = jnp.transpose(mask)[:, :, None]
    inp = jnp.transpose(x, (1, 0, 2)).astype(jnp.float32)
    for layer in range(num_layers):
        h_fwd = _lstm_direction_ref(inp, mask_tb1, *params[(layer, 0)])
        h_bwd = _lstm_direction_ref(inp[::-1], mask_tb1[::-1], *params[(layer, 1)])[::-1]
        inp = jnp.concatenate([h_fwd, h_bwd], axis=-1)
    return jnp.transpose(inp, (1, 0, 2))


# ----------------------------------------------------------------------------
# Deterministic parameter construction (matches nn.LSTM shapes)
# ----------------------------------------------------------------------------
def make_lstm_params(key, input_size, hidden_size, num_layers):
    params = {}
    scale = 1.0 / jnp.sqrt(hidden_size)
    for layer in range(num_layers):
        in_size = input_size if layer == 0 else 2 * hidden_size
        for direction in range(2):
            key, k1, k2, k3, k4 = jax.random.split(key, 5)
            w_ih = scale * jax.random.normal(k1, (4 * hidden_size, in_size), jnp.float32)
            w_hh = scale * jax.random.normal(k2, (4 * hidden_size, hidden_size), jnp.float32)
            b_ih = scale * jax.random.normal(k3, (4 * hidden_size,), jnp.float32)
            b_hh = scale * jax.random.normal(k4, (4 * hidden_size,), jnp.float32)
            params[(layer, direction)] = (w_ih, w_hh, b_ih, b_hh)
    return params


if __name__ == "__main__":
    batch, seq_len, input_size, hidden_size, num_layers = 8, 12, 16, 32, 2
    tc = 8   # timesteps per grid step (time chunk)

    key = jax.random.PRNGKey(0)
    k_x, k_p = jax.random.split(key)
    x = jax.random.normal(k_x, (batch, seq_len, input_size), jnp.float32)
    lengths = jnp.array([12, 9, 7, 5, 12, 3, 1, 8], dtype=jnp.int32)  # variable lengths
    params = make_lstm_params(k_p, input_size, hidden_size, num_layers)

    out = rnn_encoder_forward(x, lengths, params,
                              num_layers=num_layers, hidden_size=hidden_size, tc=tc)
    out = jax.block_until_ready(out)

    ref = jax.block_until_ready(rnn_encoder_ref(x, lengths, params, num_layers))
    assert out.shape == (batch, seq_len, 2 * hidden_size)
    assert jnp.max(jnp.abs(out - ref)) < 1e-4, "Pallas LSTM mismatch vs reference"

    print("KERNEL_OK")
</pallas_src>

<mosaic_0001>
module attributes {stable_mosaic.version = 11 : i64} {
  func.func @_bilstm_chunk_kernel(%arg0: i32, %arg1: i32, %arg2: memref<8x1xi32, #tpu.memory_space<vmem>>, %arg3: memref<1x8x8x128xf32, #tpu.memory_space<vmem>>, %arg4: memref<1x32x128xf32, #tpu.memory_space<vmem>>, %arg5: memref<1x8x8x32xf32, #tpu.memory_space<vmem>>, %arg6: memref<8x32xf32, #tpu.memory_space<vmem>>, %arg7: memref<8x32xf32, #tpu.memory_space<vmem>>) attributes {dimension_semantics = [#tpu.dimension_semantics<parallel>, #tpu.dimension_semantics<arbitrary>], iteration_bounds = array<i64: 2, 2>, scalar_prefetch = 0 : i64, scratch_operands = 2 : i64, tpu.core_type = #tpu.core_type<tc>, window_params = [{pipeline_mode = #tpu.pipeline_mode<synchronous>, transform_indices = @transform_0, window_bounds = array<i64: 8, 1>}, {transform_indices = @transform_1, window_bounds = array<i64: 1, 8, 8, 128>}, {transform_indices = @transform_2, window_bounds = array<i64: 1, 32, 128>}, {transform_indices = @transform_3, window_bounds = array<i64: 1, 8, 8, 32>}]} {
    %c0_i32 = arith.constant 0 : i32
    %0 = arith.cmpi eq, %arg1, %c0_i32 : i32
    %1 = arith.extui %0 : i1 to i32
    %c0_i32_0 = arith.constant 0 : i32
    %2 = arith.cmpi ne, %1, %c0_i32_0 : i32
    scf.if %2 {
      %cst_184 = arith.constant 0.000000e+00 : f32
      %515 = vector.broadcast %cst_184 : f32 to vector<8x32xf32>
      %c0_185 = arith.constant 0 : index
      %c0_186 = arith.constant 0 : index
      %516 = vector.load %arg6[%c0_185, %c0_186] : memref<8x32xf32, #tpu.memory_space<vmem>>, vector<8x32xf32>
      tpu.vector_store %arg6[%c0_185, %c0_186], %515 {strides = array<i32>} : memref<8x32xf32, #tpu.memory_space<vmem>>, vector<8x32xf32>,
      %cst_187 = arith.constant 0.000000e+00 : f32
      %517 = vector.broadcast %cst_187 : f32 to vector<8x32xf32>
      %c0_188 = arith.constant 0 : index
      %c0_189 = arith.constant 0 : index
      %518 = vector.load %arg7[%c0_188, %c0_189] : memref<8x32xf32, #tpu.memory_space<vmem>>, vector<8x32xf32>
      tpu.vector_store %arg7[%c0_188, %c0_189], %517 {strides = array<i32>} : memref<8x32xf32, #tpu.memory_space<vmem>>, vector<8x32xf32>,
    } else {
    }
    %c0 = arith.constant 0 : index
    %c0_1 = arith.constant 0 : index
    %3 = vector.load %arg2[%c0, %c0_1] : memref<8x1xi32, #tpu.memory_space<vmem>>, vector<8x1xi32>
    %c0_2 = arith.constant 0 : index
    %c0_3 = arith.constant 0 : index
    %c0_4 = arith.constant 0 : index
    %4 = vector.load %arg4[%c0_2, %c0_3, %c0_4] : memref<1x32x128xf32, #tpu.memory_space<vmem>>, vector<1x32x128xf32>
    %5 = vector.shape_cast %4 : vector<1x32x128xf32> to vector<32x128xf32>
    %c2_i32 = arith.constant 2 : i32
    %6 = arith.muli %c2_i32, %arg1 : i32
    %c1_i32 = arith.constant 1 : i32
    %7 = arith.subi %c1_i32, %6 : i32
    %8 = arith.muli %arg0, %7 : i32
    %9 = arith.addi %arg1, %8 : i32
    %c8_i32 = arith.constant 8 : i32
    %10 = arith.muli %9, %c8_i32 : i32
    %c0_i32_5 = arith.constant 0 : i32
    %c2_i32_6 = arith.constant 2 : i32
    %11 = arith.muli %c2_i32_6, %c0_i32_5 : i32
    %c7_i32 = arith.constant 7 : i32
    %12 = arith.subi %c7_i32, %11 : i32
    %13 = arith.muli %arg0, %12 : i32
    %14 = arith.addi %c0_i32_5, %13 : i32
    %15 = arith.addi %10, %14 : i32
    %c0_7 = arith.constant 0 : index
    %c0_8 = arith.constant 0 : index
    %16 = vector.load %arg6[%c0_7, %c0_8] : memref<8x32xf32, #tpu.memory_space<vmem>>, vector<8x32xf32>
    %c0_9 = arith.constant 0 : index
    %c0_10 = arith.constant 0 : index
    %17 = vector.load %arg7[%c0_9, %c0_10] : memref<8x32xf32, #tpu.memory_space<vmem>>, vector<8x32xf32>
    %c0_11 = arith.constant 0 : index
    %18 = arith.index_cast %14 : i32 to index
    %c0_12 = arith.constant 0 : index
    %c0_13 = arith.constant 0 : index
    %19 = vector.load %arg3[%c0_11, %18, %c0_12, %c0_13] : memref<1x8x8x128xf32, #tpu.memory_space<vmem>>, vector<1x1x8x128xf32>
    %20 = vector.shape_cast %19 : vector<1x1x8x128xf32> to vector<8x128xf32>
    %cst = arith.constant dense<0.000000e+00> : vector<8x128xf32>
    %21 = tpu.matmul %16, %5, %cst {dimension_numbers = #tpu.dot_dimension_numbers<[1], [0], [0], [1], [0, 0, 1, 1], [], []>} : vector<8x32xf32>, vector<32x128xf32>, vector<8x128xf32> -> vector<8x128xf32>
    %22 = arith.addf %20, %21 : vector<8x128xf32>
    %23 = vector.extract_strided_slice %22 {offsets = [0, 0], sizes = [8, 32], strides = [1, 1]} : vector<8x128xf32> to vector<8x32xf32>
    %24 = arith.negf %23 : vector<8x32xf32>
    %25 = math.exp %24 : vector<8x32xf32>
    %cst_14 = arith.constant 1.000000e+00 : f32
    %26 = vector.broadcast %cst_14 : f32 to vector<8x32xf32>
    %27 = arith.addf %26, %25 : vector<8x32xf32>
    %28 = arith.divf %26, %27 : vector<8x32xf32>
    %29 = vector.extract_strided_slice %22 {offsets = [0, 32], sizes = [8, 32], strides = [1, 1]} : vector<8x128xf32> to vector<8x32xf32>
    %30 = arith.negf %29 : vector<8x32xf32>
    %31 = math.exp %30 : vector<8x32xf32>
    %cst_15 = arith.constant 1.000000e+00 : f32
    %32 = vector.broadcast %cst_15 : f32 to vector<8x32xf32>
    %33 = arith.addf %32, %31 : vector<8x32xf32>
    %34 = arith.divf %32, %33 : vector<8x32xf32>
    %35 = vector.extract_strided_slice %22 {offsets = [0, 64], sizes = [8, 32], strides = [1, 1]} : vector<8x128xf32> to vector<8x32xf32>
    %36 = math.tanh %35 : vector<8x32xf32>
    %37 = vector.extract_strided_slice %22 {offsets = [0, 96], sizes = [8, 32], strides = [1, 1]} : vector<8x128xf32> to vector<8x32xf32>
    %38 = arith.negf %37 : vector<8x32xf32>
    %39 = math.exp %38 : vector<8x32xf32>
    %cst_16 = arith.constant 1.000000e+00 : f32
    %40 = vector.broadcast %cst_16 : f32 to vector<8x32xf32>
    %41 = arith.addf %40, %39 : vector<8x32xf32>
    %42 = arith.divf %40, %41 : vector<8x32xf32>
    %43 = arith.mulf %34, %17 : vector<8x32xf32>
    %44 = arith.mulf %28, %36 : vector<8x32xf32>
    %45 = arith.addf %43, %44 : vector<8x32xf32>
    %46 = math.tanh %45 : vector<8x32xf32>
    %47 = arith.mulf %42, %46 : vector<8x32xf32>
    %48 = vector.broadcast %15 : i32 to vector<8x1xi32>
    %49 = arith.cmpi slt, %48, %3 : vector<8x1xi32>
    %50 = arith.extui %49 : vector<8x1xi1> to vector<8x1xi32>
    %51 = arith.sitofp %50 : vector<8x1xi32> to vector<8x1xf32>
    %52 = vector.broadcast %51 : vector<8x1xf32> to vector<8x32xf32>
    %53 = arith.mulf %52, %47 : vector<8x32xf32>
    %cst_17 = arith.constant 1.000000e+00 : f32
    %54 = vector.broadcast %cst_17 : f32 to vector<8x1xf32>
    %55 = arith.subf %54, %51 : vector<8x1xf32>
    %56 = vector.broadcast %55 : vector<8x1xf32> to vector<8x32xf32>
    %57 = arith.mulf %56, %16 : vector<8x32xf32>
    %58 = arith.addf %53, %57 : vector<8x32xf32>
    %c0_18 = arith.constant 0 : index
    %c0_19 = arith.constant 0 : index
    %59 = vector.load %arg6[%c0_18, %c0_19] : memref<8x32xf32, #tpu.memory_space<vmem>>, vector<8x32xf32>
    tpu.vector_store %arg6[%c0_18, %c0_19], %58 {strides = array<i32>} : memref<8x32xf32, #tpu.memory_space<vmem>>, vector<8x32xf32>,
    %60 = vector.broadcast %51 : vector<8x1xf32> to vector<8x32xf32>
    %61 = arith.mulf %60, %45 : vector<8x32xf32>
    %cst_20 = arith.constant 1.000000e+00 : f32
    %62 = vector.broadcast %cst_20 : f32 to vector<8x1xf32>
    %63 = arith.subf %62, %51 : vector<8x1xf32>
    %64 = vector.broadcast %63 : vector<8x1xf32> to vector<8x32xf32>
    %65 = arith.mulf %64, %17 : vector<8x32xf32>
    %66 = arith.addf %61, %65 : vector<8x32xf32>
    %c0_21 = arith.constant 0 : index
    %c0_22 = arith.constant 0 : index
    %67 = vector.load %arg7[%c0_21, %c0_22] : memref<8x32xf32, #tpu.memory_space<vmem>>, vector<8x32xf32>
    tpu.vector_store %arg7[%c0_21, %c0_22], %66 {strides = array<i32>} : memref<8x32xf32, #tpu.memory_space<vmem>>, vector<8x32xf32>,
    %68 = vector.broadcast %51 : vector<8x1xf32> to vector<8x32xf32>
    %69 = arith.mulf %68, %47 : vector<8x32xf32>
    %c0_23 = arith.constant 0 : index
    %70 = arith.index_cast %14 : i32 to index
    %c0_24 = arith.constant 0 : index
    %c0_25 = arith.constant 0 : index
    %71 = vector.load %arg5[%c0_23, %70, %c0_24, %c0_25] : memref<1x8x8x32xf32, #tpu.memory_space<vmem>>, vector<1x1x8x32xf32>
    %72 = vector.shape_cast %71 : vector<1x1x8x32xf32> to vector<8x32xf32>
    %73 = vector.shape_cast %69 : vector<8x32xf32> to vector<1x1x8x32xf32>
    tpu.vector_store %arg5[%c0_23, %70, %c0_24, %c0_25], %73 {strides = array<i32>} : memref<1x8x8x32xf32, #tpu.memory_space<vmem>>, vector<1x1x8x32xf32>,
    %c1_i32_26 = arith.constant 1 : i32
    %c2_i32_27 = arith.constant 2 : i32
    %74 = arith.muli %c2_i32_27, %c1_i32_26 : i32
    %c7_i32_28 = arith.constant 7 : i32
    %75 = arith.subi %c7_i32_28, %74 : i32
    %76 = arith.muli %arg0, %75 : i32
    %77 = arith.addi %c1_i32_26, %76 : i32
    %78 = arith.addi %10, %77 : i32
    %c0_29 = arith.constant 0 : index
    %c0_30 = arith.constant 0 : index
    %79 = vector.load %arg6[%c0_29, %c0_30] : memref<8x32xf32, #tpu.memory_space<vmem>>, vector<8x32xf32>
    %c0_31 = arith.constant 0 : index
    %c0_32 = arith.constant 0 : index
    %80 = vector.load %arg7[%c0_31, %c0_32] : memref<8x32xf32, #tpu.memory_space<vmem>>, vector<8x32xf32>
    %c0_33 = arith.constant 0 : index
    %81 = arith.index_cast %77 : i32 to index
    %c0_34 = arith.constant 0 : index
    %c0_35 = arith.constant 0 : index
    %82 = vector.load %arg3[%c0_33, %81, %c0_34, %c0_35] : memref<1x8x8x128xf32, #tpu.memory_space<vmem>>, vector<1x1x8x128xf32>
    %83 = vector.shape_cast %82 : vector<1x1x8x128xf32> to vector<8x128xf32>
    %cst_36 = arith.constant dense<0.000000e+00> : vector<8x128xf32>
    %84 = tpu.matmul %79, %5, %cst_36 {dimension_numbers = #tpu.dot_dimension_numbers<[1], [0], [0], [1], [0, 0, 1, 1], [], []>} : vector<8x32xf32>, vector<32x128xf32>, vector<8x128xf32> -> vector<8x128xf32>
    %85 = arith.addf %83, %84 : vector<8x128xf32>
    %86 = vector.extract_strided_slice %85 {offsets = [0, 0], sizes = [8, 32], strides = [1, 1]} : vector<8x128xf32> to vector<8x32xf32>
    %87 = arith.negf %86 : vector<8x32xf32>
    %88 = math.exp %87 : vector<8x32xf32>
    %cst_37 = arith.constant 1.000000e+00 : f32
    %89 = vector.broadcast %cst_37 : f32 to vector<8x32xf32>
    %90 = arith.addf %89, %88 : vector<8x32xf32>
    %91 = arith.divf %89, %90 : vector<8x32xf32>
    %92 = vector.extract_strided_slice %85 {offsets = [0, 32], sizes = [8, 32], strides = [1, 1]} : vector<8x128xf32> to vector<8x32xf32>
    %93 = arith.negf %92 : vector<8x32xf32>
    %94 = math.exp %93 : vector<8x32xf32>
    %cst_38 = arith.constant 1.000000e+00 : f32
    %95 = vector.broadcast %cst_38 : f32 to vector<8x32xf32>
    %96 = arith.addf %95, %94 : vector<8x32xf32>
    %97 = arith.divf %95, %96 : vector<8x32xf32>
    %98 = vector.extract_strided_slice %85 {offsets = [0, 64], sizes = [8, 32], strides = [1, 1]} : vector<8x128xf32> to vector<8x32xf32>
    %99 = math.tanh %98 : vector<8x32xf32>
    %100 = vector.extract_strided_slice %85 {offsets = [0, 96], sizes = [8, 32], strides = [1, 1]} : vector<8x128xf32> to vector<8x32xf32>
    %101 = arith.negf %100 : vector<8x32xf32>
    %102 = math.exp %101 : vector<8x32xf32>
    %cst_39 = arith.constant 1.000000e+00 : f32
    %103 = vector.broadcast %cst_39 : f32 to vector<8x32xf32>
    %104 = arith.addf %103, %102 : vector<8x32xf32>
    %105 = arith.divf %103, %104 : vector<8x32xf32>
    %106 = arith.mulf %97, %80 : vector<8x32xf32>
    %107 = arith.mulf %91, %99 : vector<8x32xf32>
    %108 = arith.addf %106, %107 : vector<8x32xf32>
    %109 = math.tanh %108 : vector<8x32xf32>
    %110 = arith.mulf %105, %109 : vector<8x32xf32>
    %111 = vector.broadcast %78 : i32 to vector<8x1xi32>
    %112 = arith.cmpi slt, %111, %3 : vector<8x1xi32>
    %113 = arith.extui %112 : vector<8x1xi1> to vector<8x1xi32>
    %114 = arith.sitofp %113 : vector<8x1xi32> to vector<8x1xf32>
    %115 = vector.broadcast %114 : vector<8x1xf32> to vector<8x32xf32>
    %116 = arith.mulf %115, %110 : vector<8x32xf32>
    %cst_40 = arith.constant 1.000000e+00 : f32
    %117 = vector.broadcast %cst_40 : f32 to vector<8x1xf32>
    %118 = arith.subf %117, %114 : vector<8x1xf32>
    %119 = vector.broadcast %118 : vector<8x1xf32> to vector<8x32xf32>
    %120 = arith.mulf %119, %79 : vector<8x32xf32>
    %121 = arith.addf %116, %120 : vector<8x32xf32>
    %c0_41 = arith.constant 0 : index
    %c0_42 = arith.constant 0 : index
    %122 = vector.load %arg6[%c0_41, %c0_42] : memref<8x32xf32, #tpu.memory_space<vmem>>, vector<8x32xf32>
    tpu.vector_store %arg6[%c0_41, %c0_42], %121 {strides = array<i32>} : memref<8x32xf32, #tpu.memory_space<vmem>>, vector<8x32xf32>,
    %123 = vector.broadcast %114 : vector<8x1xf32> to vector<8x32xf32>
    %124 = arith.mulf %123, %108 : vector<8x32xf32>
    %cst_43 = arith.constant 1.000000e+00 : f32
    %125 = vector.broadcast %cst_43 : f32 to vector<8x1xf32>
    %126 = arith.subf %125, %114 : vector<8x1xf32>
    %127 = vector.broadcast %126 : vector<8x1xf32> to vector<8x32xf32>
    %128 = arith.mulf %127, %80 : vector<8x32xf32>
    %129 = arith.addf %124, %128 : vector<8x32xf32>
    %c0_44 = arith.constant 0 : index
    %c0_45 = arith.constant 0 : index
    %130 = vector.load %arg7[%c0_44, %c0_45] : memref<8x32xf32, #tpu.memory_space<vmem>>, vector<8x32xf32>
    tpu.vector_store %arg7[%c0_44, %c0_45], %129 {strides = array<i32>} : memref<8x32xf32, #tpu.memory_space<vmem>>, vector<8x32xf32>,
    %131 = vector.broadcast %114 : vector<8x1xf32> to vector<8x32xf32>
    %132 = arith.mulf %131, %110 : vector<8x32xf32>
    %c0_46 = arith.constant 0 : index
    %133 = arith.index_cast %77 : i32 to index
    %c0_47 = arith.constant 0 : index
    %c0_48 = arith.constant 0 : index
    %134 = vector.load %arg5[%c0_46, %133, %c0_47, %c0_48] : memref<1x8x8x32xf32, #tpu.memory_space<vmem>>, vector<1x1x8x32xf32>
    %135 = vector.shape_cast %134 : vector<1x1x8x32xf32> to vector<8x32xf32>
    %136 = vector.shape_cast %132 : vector<8x32xf32> to vector<1x1x8x32xf32>
    tpu.vector_store %arg5[%c0_46, %133, %c0_47, %c0_48], %136 {strides = array<i32>} : memref<1x8x8x32xf32, #tpu.memory_space<vmem>>, vector<1x1x8x32xf32>,
    %c2_i32_49 = arith.constant 2 : i32
    %c2_i32_50 = arith.constant 2 : i32
    %137 = arith.muli %c2_i32_50, %c2_i32_49 : i32
    %c7_i32_51 = arith.constant 7 : i32
    %138 = arith.subi %c7_i32_51, %137 : i32
    %139 = arith.muli %arg0, %138 : i32
    %140 = arith.addi %c2_i32_49, %139 : i32
    %141 = arith.addi %10, %140 : i32
    %c0_52 = arith.constant 0 : index
    %c0_53 = arith.constant 0 : index
    %142 = vector.load %arg6[%c0_52, %c0_53] : memref<8x32xf32, #tpu.memory_space<vmem>>, vector<8x32xf32>
    %c0_54 = arith.constant 0 : index
    %c0_55 = arith.constant 0 : index
    %143 = vector.load %arg7[%c0_54, %c0_55] : memref<8x32xf32, #tpu.memory_space<vmem>>, vector<8x32xf32>
    %c0_56 = arith.constant 0 : index
    %144 = arith.index_cast %140 : i32 to index
    %c0_57 = arith.constant 0 : index
    %c0_58 = arith.constant 0 : index
    %145 = vector.load %arg3[%c0_56, %144, %c0_57, %c0_58] : memref<1x8x8x128xf32, #tpu.memory_space<vmem>>, vector<1x1x8x128xf32>
    %146 = vector.shape_cast %145 : vector<1x1x8x128xf32> to vector<8x128xf32>
    %cst_59 = arith.constant dense<0.000000e+00> : vector<8x128xf32>
    %147 = tpu.matmul %142, %5, %cst_59 {dimension_numbers = #tpu.dot_dimension_numbers<[1], [0], [0], [1], [0, 0, 1, 1], [], []>} : vector<8x32xf32>, vector<32x128xf32>, vector<8x128xf32> -> vector<8x128xf32>
    %148 = arith.addf %146, %147 : vector<8x128xf32>
    %149 = vector.extract_strided_slice %148 {offsets = [0, 0], sizes = [8, 32], strides = [1, 1]} : vector<8x128xf32> to vector<8x32xf32>
    %150 = arith.negf %149 : vector<8x32xf32>
    %151 = math.exp %150 : vector<8x32xf32>
    %cst_60 = arith.constant 1.000000e+00 : f32
    %152 = vector.broadcast %cst_60 : f32 to vector<8x32xf32>
    %153 = arith.addf %152, %151 : vector<8x32xf32>
    %154 = arith.divf %152, %153 : vector<8x32xf32>
    %155 = vector.extract_strided_slice %148 {offsets = [0, 32], sizes = [8, 32], strides = [1, 1]} : vector<8x128xf32> to vector<8x32xf32>
    %156 = arith.negf %155 : vector<8x32xf32>
    %157 = math.exp %156 : vector<8x32xf32>
    %cst_61 = arith.constant 1.000000e+00 : f32
    %158 = vector.broadcast %cst_61 : f32 to vector<8x32xf32>
    %159 = arith.addf %158, %157 : vector<8x32xf32>
    %160 = arith.divf %158, %159 : vector<8x32xf32>
    %161 = vector.extract_strided_slice %148 {offsets = [0, 64], sizes = [8, 32], strides = [1, 1]} : vector<8x128xf32> to vector<8x32xf32>
    %162 = math.tanh %161 : vector<8x32xf32>
    %163 = vector.extract_strided_slice %148 {offsets = [0, 96], sizes = [8, 32], strides = [1, 1]} : vector<8x128xf32> to vector<8x32xf32>
    %164 = arith.negf %163 : vector<8x32xf32>
    %165 = math.exp %164 : vector<8x32xf32>
    %cst_62 = arith.constant 1.000000e+00 : f32
    %166 = vector.broadcast %cst_62 : f32 to vector<8x32xf32>
    %167 = arith.addf %166, %165 : vector<8x32xf32>
    %168 = arith.divf %166, %167 : vector<8x32xf32>
    %169 = arith.mulf %160, %143 : vector<8x32xf32>
    %170 = arith.mulf %154, %162 : vector<8x32xf32>
    %171 = arith.addf %169, %170 : vector<8x32xf32>
    %172 = math.tanh %171 : vector<8x32xf32>
    %173 = arith.mulf %168, %172 : vector<8x32xf32>
    %174 = vector.broadcast %141 : i32 to vector<8x1xi32>
    %175 = arith.cmpi slt, %174, %3 : vector<8x1xi32>
    %176 = arith.extui %175 : vector<8x1xi1> to vector<8x1xi32>
    %177 = arith.sitofp %176 : vector<8x1xi32> to vector<8x1xf32>
    %178 = vector.broadcast %177 : vector<8x1xf32> to vector<8x32xf32>
    %179 = arith.mulf %178, %173 : vector<8x32xf32>
    %cst_63 = arith.constant 1.000000e+00 : f32
    %180 = vector.broadcast %cst_63 : f32 to vector<8x1xf32>
    %181 = arith.subf %180, %177 : vector<8x1xf32>
    %182 = vector.broadcast %181 : vector<8x1xf32> to vector<8x32xf32>
    %183 = arith.mulf %182, %142 : vector<8x32xf32>
    %184 = arith.addf %179, %183 : vector<8x32xf32>
    %c0_64 = arith.constant 0 : index
    %c0_65 = arith.constant 0 : index
    %185 = vector.load %arg6[%c0_64, %c0_65] : memref<8x32xf32, #tpu.memory_space<vmem>>, vector<8x32xf32>
    tpu.vector_store %arg6[%c0_64, %c0_65], %184 {strides = array<i32>} : memref<8x32xf32, #tpu.memory_space<vmem>>, vector<8x32xf32>,
    %186 = vector.broadcast %177 : vector<8x1xf32> to vector<8x32xf32>
    %187 = arith.mulf %186, %171 : vector<8x32xf32>
    %cst_66 = arith.constant 1.000000e+00 : f32
    %188 = vector.broadcast %cst_66 : f32 to vector<8x1xf32>
    %189 = arith.subf %188, %177 : vector<8x1xf32>
    %190 = vector.broadcast %189 : vector<8x1xf32> to vector<8x32xf32>
    %191 = arith.mulf %190, %143 : vector<8x32xf32>
    %192 = arith.addf %187, %191 : vector<8x32xf32>
    %c0_67 = arith.constant 0 : index
    %c0_68 = arith.constant 0 : index
    %193 = vector.load %arg7[%c0_67, %c0_68] : memref<8x32xf32, #tpu.memory_space<vmem>>, vector<8x32xf32>
    tpu.vector_store %arg7[%c0_67, %c0_68], %192 {strides = array<i32>} : memref<8x32xf32, #tpu.memory_space<vmem>>, vector<8x32xf32>,
    %194 = vector.broadcast %177 : vector<8x1xf32> to vector<8x32xf32>
    %195 = arith.mulf %194, %173 : vector<8x32xf32>
    %c0_69 = arith.constant 0 : index
    %196 = arith.index_cast %140 : i32 to index
    %c0_70 = arith.constant 0 : index
    %c0_71 = arith.constant 0 : index
    %197 = vector.load %arg5[%c0_69, %196, %c0_70, %c0_71] : memref<1x8x8x32xf32, #tpu.memory_space<vmem>>, vector<1x1x8x32xf32>
    %198 = vector.shape_cast %197 : vector<1x1x8x32xf32> to vector<8x32xf32>
    %199 = vector.shape_cast %195 : vector<8x32xf32> to vector<1x1x8x32xf32>
    tpu.vector_store %arg5[%c0_69, %196, %c0_70, %c0_71], %199 {strides = array<i32>} : memref<1x8x8x32xf32, #tpu.memory_space<vmem>>, vector<1x1x8x32xf32>,
    %c3_i32 = arith.constant 3 : i32
    %c2_i32_72 = arith.constant 2 : i32
    %200 = arith.muli %c2_i32_72, %c3_i32 : i32
    %c7_i32_73 = arith.constant 7 : i32
    %201 = arith.subi %c7_i32_73, %200 : i32
    %202 = arith.muli %arg0, %201 : i32
    %203 = arith.addi %c3_i32, %202 : i32
    %204 = arith.addi %10, %203 : i32
    %c0_74 = arith.constant 0 : index
    %c0_75 = arith.constant 0 : index
    %205 = vector.load %arg6[%c0_74, %c0_75] : memref<8x32xf32, #tpu.memory_space<vmem>>, vector<8x32xf32>
    %c0_76 = arith.constant 0 : index
    %c0_77 = arith.constant 0 : index
    %206 = vector.load %arg7[%c0_76, %c0_77] : memref<8x32xf32, #tpu.memory_space<vmem>>, vector<8x32xf32>
    %c0_78 = arith.constant 0 : index
    %207 = arith.index_cast %203 : i32 to index
    %c0_79 = arith.constant 0 : index
    %c0_80 = arith.constant 0 : index
    %208 = vector.load %arg3[%c0_78, %207, %c0_79, %c0_80] : memref<1x8x8x128xf32, #tpu.memory_space<vmem>>, vector<1x1x8x128xf32>
    %209 = vector.shape_cast %208 : vector<1x1x8x128xf32> to vector<8x128xf32>
    %cst_81 = arith.constant dense<0.000000e+00> : vector<8x128xf32>
    %210 = tpu.matmul %205, %5, %cst_81 {dimension_numbers = #tpu.dot_dimension_numbers<[1], [0], [0], [1], [0, 0, 1, 1], [], []>} : vector<8x32xf32>, vector<32x128xf32>, vector<8x128xf32> -> vector<8x128xf32>
    %211 = arith.addf %209, %210 : vector<8x128xf32>
    %212 = vector.extract_strided_slice %211 {offsets = [0, 0], sizes = [8, 32], strides = [1, 1]} : vector<8x128xf32> to vector<8x32xf32>
    %213 = arith.negf %212 : vector<8x32xf32>
    %214 = math.exp %213 : vector<8x32xf32>
    %cst_82 = arith.constant 1.000000e+00 : f32
    %215 = vector.broadcast %cst_82 : f32 to vector<8x32xf32>
    %216 = arith.addf %215, %214 : vector<8x32xf32>
    %217 = arith.divf %215, %216 : vector<8x32xf32>
    %218 = vector.extract_strided_slice %211 {offsets = [0, 32], sizes = [8, 32], strides = [1, 1]} : vector<8x128xf32> to vector<8x32xf32>
    %219 = arith.negf %218 : vector<8x32xf32>
    %220 = math.exp %219 : vector<8x32xf32>
    %cst_83 = arith.constant 1.000000e+00 : f32
    %221 = vector.broadcast %cst_83 : f32 to vector<8x32xf32>
    %222 = arith.addf %221, %220 : vector<8x32xf32>
    %223 = arith.divf %221, %222 : vector<8x32xf32>
    %224 = vector.extract_strided_slice %211 {offsets = [0, 64], sizes = [8, 32], strides = [1, 1]} : vector<8x128xf32> to vector<8x32xf32>
    %225 = math.tanh %224 : vector<8x32xf32>
    %226 = vector.extract_strided_slice %211 {offsets = [0, 96], sizes = [8, 32], strides = [1, 1]} : vector<8x128xf32> to vector<8x32xf32>
    %227 = arith.negf %226 : vector<8x32xf32>
    %228 = math.exp %227 : vector<8x32xf32>
    %cst_84 = arith.constant 1.000000e+00 : f32
    %229 = vector.broadcast %cst_84 : f32 to vector<8x32xf32>
    %230 = arith.addf %229, %228 : vector<8x32xf32>
    %231 = arith.divf %229, %230 : vector<8x32xf32>
    %232 = arith.mulf %223, %206 : vector<8x32xf32>
    %233 = arith.mulf %217, %225 : vector<8x32xf32>
    %234 = arith.addf %232, %233 : vector<8x32xf32>
    %235 = math.tanh %234 : vector<8x32xf32>
    %236 = arith.mulf %231, %235 : vector<8x32xf32>
    %237 = vector.broadcast %204 : i32 to vector<8x1xi32>
    %238 = arith.cmpi slt, %237, %3 : vector<8x1xi32>
    %239 = arith.extui %238 : vector<8x1xi1> to vector<8x1xi32>
    %240 = arith.sitofp %239 : vector<8x1xi32> to vector<8x1xf32>
    %241 = vector.broadcast %240 : vector<8x1xf32> to vector<8x32xf32>
    %242 = arith.mulf %241, %236 : vector<8x32xf32>
    %cst_85 = arith.constant 1.000000e+00 : f32
    %243 = vector.broadcast %cst_85 : f32 to vector<8x1xf32>
    %244 = arith.subf %243, %240 : vector<8x1xf32>
    %245 = vector.broadcast %244 : vector<8x1xf32> to vector<8x32xf32>
    %246 = arith.mulf %245, %205 : vector<8x32xf32>
    %247 = arith.addf %242, %246 : vector<8x32xf32>
    %c0_86 = arith.constant 0 : index
    %c0_87 = arith.constant 0 : index
    %248 = vector.load %arg6[%c0_86, %c0_87] : memref<8x32xf32, #tpu.memory_space<vmem>>, vector<8x32xf32>
    tpu.vector_store %arg6[%c0_86, %c0_87], %247 {strides = array<i32>} : memref<8x32xf32, #tpu.memory_space<vmem>>, vector<8x32xf32>,
    %249 = vector.broadcast %240 : vector<8x1xf32> to vector<8x32xf32>
    %250 = arith.mulf %249, %234 : vector<8x32xf32>
    %cst_88 = arith.constant 1.000000e+00 : f32
    %251 = vector.broadcast %cst_88 : f32 to vector<8x1xf32>
    %252 = arith.subf %251, %240 : vector<8x1xf32>
    %253 = vector.broadcast %252 : vector<8x1xf32> to vector<8x32xf32>
    %254 = arith.mulf %253, %206 : vector<8x32xf32>
    %255 = arith.addf %250, %254 : vector<8x32xf32>
    %c0_89 = arith.constant 0 : index
    %c0_90 = arith.constant 0 : index
    %256 = vector.load %arg7[%c0_89, %c0_90] : memref<8x32xf32, #tpu.memory_space<vmem>>, vector<8x32xf32>
    tpu.vector_store %arg7[%c0_89, %c0_90], %255 {strides = array<i32>} : memref<8x32xf32, #tpu.memory_space<vmem>>, vector<8x32xf32>,
    %257 = vector.broadcast %240 : vector<8x1xf32> to vector<8x32xf32>
    %258 = arith.mulf %257, %236 : vector<8x32xf32>
    %c0_91 = arith.constant 0 : index
    %259 = arith.index_cast %203 : i32 to index
    %c0_92 = arith.constant 0 : index
    %c0_93 = arith.constant 0 : index
    %260 = vector.load %arg5[%c0_91, %259, %c0_92, %c0_93] : memref<1x8x8x32xf32, #tpu.memory_space<vmem>>, vector<1x1x8x32xf32>
    %261 = vector.shape_cast %260 : vector<1x1x8x32xf32> to vector<8x32xf32>
    %262 = vector.shape_cast %258 : vector<8x32xf32> to vector<1x1x8x32xf32>
    tpu.vector_store %arg5[%c0_91, %259, %c0_92, %c0_93], %262 {strides = array<i32>} : memref<1x8x8x32xf32, #tpu.memory_space<vmem>>, vector<1x1x8x32xf32>,
    %c4_i32 = arith.constant 4 : i32
    %c2_i32_94 = arith.constant 2 : i32
    %263 = arith.muli %c2_i32_94, %c4_i32 : i32
    %c7_i32_95 = arith.constant 7 : i32
    %264 = arith.subi %c7_i32_95, %263 : i32
    %265 = arith.muli %arg0, %264 : i32
    %266 = arith.addi %c4_i32, %265 : i32
    %267 = arith.addi %10, %266 : i32
    %c0_96 = arith.constant 0 : index
    %c0_97 = arith.constant 0 : index
    %268 = vector.load %arg6[%c0_96, %c0_97] : memref<8x32xf32, #tpu.memory_space<vmem>>, vector<8x32xf32>
    %c0_98 = arith.constant 0 : index
    %c0_99 = arith.constant 0 : index
    %269 = vector.load %arg7[%c0_98, %c0_99] : memref<8x32xf32, #tpu.memory_space<vmem>>, vector<8x32xf32>
    %c0_100 = arith.constant 0 : index
    %270 = arith.index_cast %266 : i32 to index
    %c0_101 = arith.constant 0 : index
    %c0_102 = arith.constant 0 : index
    %271 = vector.load %arg3[%c0_100, %270, %c0_101, %c0_102] : memref<1x8x8x128xf32, #tpu.memory_space<vmem>>, vector<1x1x8x128xf32>
    %272 = vector.shape_cast %271 : vector<1x1x8x128xf32> to vector<8x128xf32>
    %cst_103 = arith.constant dense<0.000000e+00> : vector<8x128xf32>
    %273 = tpu.matmul %268, %5, %cst_103 {dimension_numbers = #tpu.dot_dimension_numbers<[1], [0], [0], [1], [0, 0, 1, 1], [], []>} : vector<8x32xf32>, vector<32x128xf32>, vector<8x128xf32> -> vector<8x128xf32>
    %274 = arith.addf %272, %273 : vector<8x128xf32>
    %275 = vector.extract_strided_slice %274 {offsets = [0, 0], sizes = [8, 32], strides = [1, 1]} : vector<8x128xf32> to vector<8x32xf32>
    %276 = arith.negf %275 : vector<8x32xf32>
    %277 = math.exp %276 : vector<8x32xf32>
    %cst_104 = arith.constant 1.000000e+00 : f32
    %278 = vector.broadcast %cst_104 : f32 to vector<8x32xf32>
    %279 = arith.addf %278, %277 : vector<8x32xf32>
    %280 = arith.divf %278, %279 : vector<8x32xf32>
    %281 = vector.extract_strided_slice %274 {offsets = [0, 32], sizes = [8, 32], strides = [1, 1]} : vector<8x128xf32> to vector<8x32xf32>
    %282 = arith.negf %281 : vector<8x32xf32>
    %283 = math.exp %282 : vector<8x32xf32>
    %cst_105 = arith.constant 1.000000e+00 : f32
    %284 = vector.broadcast %cst_105 : f32 to vector<8x32xf32>
    %285 = arith.addf %284, %283 : vector<8x32xf32>
    %286 = arith.divf %284, %285 : vector<8x32xf32>
    %287 = vector.extract_strided_slice %274 {offsets = [0, 64], sizes = [8, 32], strides = [1, 1]} : vector<8x128xf32> to vector<8x32xf32>
    %288 = math.tanh %287 : vector<8x32xf32>
    %289 = vector.extract_strided_slice %274 {offsets = [0, 96], sizes = [8, 32], strides = [1, 1]} : vector<8x128xf32> to vector<8x32xf32>
    %290 = arith.negf %289 : vector<8x32xf32>
    %291 = math.exp %290 : vector<8x32xf32>
    %cst_106 = arith.constant 1.000000e+00 : f32
    %292 = vector.broadcast %cst_106 : f32 to vector<8x32xf32>
    %293 = arith.addf %292, %291 : vector<8x32xf32>
    %294 = arith.divf %292, %293 : vector<8x32xf32>
    %295 = arith.mulf %286, %269 : vector<8x32xf32>
    %296 = arith.mulf %280, %288 : vector<8x32xf32>
    %297 = arith.addf %295, %296 : vector<8x32xf32>
    %298 = math.tanh %297 : vector<8x32xf32>
    %299 = arith.mulf %294, %298 : vector<8x32xf32>
    %300 = vector.broadcast %267 : i32 to vector<8x1xi32>
    %301 = arith.cmpi slt, %300, %3 : vector<8x1xi32>
    %302 = arith.extui %301 : vector<8x1xi1> to vector<8x1xi32>
    %303 = arith.sitofp %302 : vector<8x1xi32> to vector<8x1xf32>
    %304 = vector.broadcast %303 : vector<8x1xf32> to vector<8x32xf32>
    %305 = arith.mulf %304, %299 : vector<8x32xf32>
    %cst_107 = arith.constant 1.000000e+00 : f32
    %306 = vector.broadcast %cst_107 : f32 to vector<8x1xf32>
    %307 = arith.subf %306, %303 : vector<8x1xf32>
    %308 = vector.broadcast %307 : vector<8x1xf32> to vector<8x32xf32>
    %309 = arith.mulf %308, %268 : vector<8x32xf32>
    %310 = arith.addf %305, %309 : vector<8x32xf32>
    %c0_108 = arith.constant 0 : index
    %c0_109 = arith.constant 0 : index
    %311 = vector.load %arg6[%c0_108, %c0_109] : memref<8x32xf32, #tpu.memory_space<vmem>>, vector<8x32xf32>
    tpu.vector_store %arg6[%c0_108, %c0_109], %310 {strides = array<i32>} : memref<8x32xf32, #tpu.memory_space<vmem>>, vector<8x32xf32>,
    %312 = vector.broadcast %303 : vector<8x1xf32> to vector<8x32xf32>
    %313 = arith.mulf %312, %297 : vector<8x32xf32>
    %cst_110 = arith.constant 1.000000e+00 : f32
    %314 = vector.broadcast %cst_110 : f32 to vector<8x1xf32>
    %315 = arith.subf %314, %303 : vector<8x1xf32>
    %316 = vector.broadcast %315 : vector<8x1xf32> to vector<8x32xf32>
    %317 = arith.mulf %316, %269 : vector<8x32xf32>
    %318 = arith.addf %313, %317 : vector<8x32xf32>
    %c0_111 = arith.constant 0 : index
    %c0_112 = arith.constant 0 : index
    %319 = vector.load %arg7[%c0_111, %c0_112] : memref<8x32xf32, #tpu.memory_space<vmem>>, vector<8x32xf32>
    tpu.vector_store %arg7[%c0_111, %c0_112], %318 {strides = array<i32>} : memref<8x32xf32, #tpu.memory_space<vmem>>, vector<8x32xf32>,
    %320 = vector.broadcast %303 : vector<8x1xf32> to vector<8x32xf32>
    %321 = arith.mulf %320, %299 : vector<8x32xf32>
    %c0_113 = arith.constant 0 : index
    %322 = arith.index_cast %266 : i32 to index
    %c0_114 = arith.constant 0 : index
    %c0_115 = arith.constant 0 : index
    %323 = vector.load %arg5[%c0_113, %322, %c0_114, %c0_115] : memref<1x8x8x32xf32, #tpu.memory_space<vmem>>, vector<1x1x8x32xf32>
    %324 = vector.shape_cast %323 : vector<1x1x8x32xf32> to vector<8x32xf32>
    %325 = vector.shape_cast %321 : vector<8x32xf32> to vector<1x1x8x32xf32>
    tpu.vector_store %arg5[%c0_113, %322, %c0_114, %c0_115], %325 {strides = array<i32>} : memref<1x8x8x32xf32, #tpu.memory_space<vmem>>, vector<1x1x8x32xf32>,
    %c5_i32 = arith.constant 5 : i32
    %c2_i32_116 = arith.constant 2 : i32
    %326 = arith.muli %c2_i32_116, %c5_i32 : i32
    %c7_i32_117 = arith.constant 7 : i32
    %327 = arith.subi %c7_i32_117, %326 : i32
    %328 = arith.muli %arg0, %327 : i32
    %329 = arith.addi %c5_i32, %328 : i32
    %330 = arith.addi %10, %329 : i32
    %c0_118 = arith.constant 0 : index
    %c0_119 = arith.constant 0 : index
    %331 = vector.load %arg6[%c0_118, %c0_119] : memref<8x32xf32, #tpu.memory_space<vmem>>, vector<8x32xf32>
    %c0_120 = arith.constant 0 : index
    %c0_121 = arith.constant 0 : index
    %332 = vector.load %arg7[%c0_120, %c0_121] : memref<8x32xf32, #tpu.memory_space<vmem>>, vector<8x32xf32>
    %c0_122 = arith.constant 0 : index
    %333 = arith.index_cast %329 : i32 to index
    %c0_123 = arith.constant 0 : index
    %c0_124 = arith.constant 0 : index
    %334 = vector.load %arg3[%c0_122, %333, %c0_123, %c0_124] : memref<1x8x8x128xf32, #tpu.memory_space<vmem>>, vector<1x1x8x128xf32>
    %335 = vector.shape_cast %334 : vector<1x1x8x128xf32> to vector<8x128xf32>
    %cst_125 = arith.constant dense<0.000000e+00> : vector<8x128xf32>
    %336 = tpu.matmul %331, %5, %cst_125 {dimension_numbers = #tpu.dot_dimension_numbers<[1], [0], [0], [1], [0, 0, 1, 1], [], []>} : vector<8x32xf32>, vector<32x128xf32>, vector<8x128xf32> -> vector<8x128xf32>
    %337 = arith.addf %335, %336 : vector<8x128xf32>
    %338 = vector.extract_strided_slice %337 {offsets = [0, 0], sizes = [8, 32], strides = [1, 1]} : vector<8x128xf32> to vector<8x32xf32>
    %339 = arith.negf %338 : vector<8x32xf32>
    %340 = math.exp %339 : vector<8x32xf32>
    %cst_126 = arith.constant 1.000000e+00 : f32
    %341 = vector.broadcast %cst_126 : f32 to vector<8x32xf32>
    %342 = arith.addf %341, %340 : vector<8x32xf32>
    %343 = arith.divf %341, %342 : vector<8x32xf32>
    %344 = vector.extract_strided_slice %337 {offsets = [0, 32], sizes = [8, 32], strides = [1, 1]} : vector<8x128xf32> to vector<8x32xf32>
    %345 = arith.negf %344 : vector<8x32xf32>
    %346 = math.exp %345 : vector<8x32xf32>
    %cst_127 = arith.constant 1.000000e+00 : f32
    %347 = vector.broadcast %cst_127 : f32 to vector<8x32xf32>
    %348 = arith.addf %347, %346 : vector<8x32xf32>
    %349 = arith.divf %347, %348 : vector<8x32xf32>
    %350 = vector.extract_strided_slice %337 {offsets = [0, 64], sizes = [8, 32], strides = [1, 1]} : vector<8x128xf32> to vector<8x32xf32>
    %351 = math.tanh %350 : vector<8x32xf32>
    %352 = vector.extract_strided_slice %337 {offsets = [0, 96], sizes = [8, 32], strides = [1, 1]} : vector<8x128xf32> to vector<8x32xf32>
    %353 = arith.negf %352 : vector<8x32xf32>
    %354 = math.exp %353 : vector<8x32xf32>
    %cst_128 = arith.constant 1.000000e+00 : f32
    %355 = vector.broadcast %cst_128 : f32 to vector<8x32xf32>
    %356 = arith.addf %355, %354 : vector<8x32xf32>
    %357 = arith.divf %355, %356 : vector<8x32xf32>
    %358 = arith.mulf %349, %332 : vector<8x32xf32>
    %359 = arith.mulf %343, %351 : vector<8x32xf32>
    %360 = arith.addf %358, %359 : vector<8x32xf32>
    %361 = math.tanh %360 : vector<8x32xf32>
    %362 = arith.mulf %357, %361 : vector<8x32xf32>
    %363 = vector.broadcast %330 : i32 to vector<8x1xi32>
    %364 = arith.cmpi slt, %363, %3 : vector<8x1xi32>
    %365 = arith.extui %364 : vector<8x1xi1> to vector<8x1xi32>
    %366 = arith.sitofp %365 : vector<8x1xi32> to vector<8x1xf32>
    %367 = vector.broadcast %366 : vector<8x1xf32> to vector<8x32xf32>
    %368 = arith.mulf %367, %362 : vector<8x32xf32>
    %cst_129 = arith.constant 1.000000e+00 : f32
    %369 = vector.broadcast %cst_129 : f32 to vector<8x1xf32>
    %370 = arith.subf %369, %366 : vector<8x1xf32>
    %371 = vector.broadcast %370 : vector<8x1xf32> to vector<8x32xf32>
    %372 = arith.mulf %371, %331 : vector<8x32xf32>
    %373 = arith.addf %368, %372 : vector<8x32xf32>
    %c0_130 = arith.constant 0 : index
    %c0_131 = arith.constant 0 : index
    %374 = vector.load %arg6[%c0_130, %c0_131] : memref<8x32xf32, #tpu.memory_space<vmem>>, vector<8x32xf32>
    tpu.vector_store %arg6[%c0_130, %c0_131], %373 {strides = array<i32>} : memref<8x32xf32, #tpu.memory_space<vmem>>, vector<8x32xf32>,
    %375 = vector.broadcast %366 : vector<8x1xf32> to vector<8x32xf32>
    %376 = arith.mulf %375, %360 : vector<8x32xf32>
    %cst_132 = arith.constant 1.000000e+00 : f32
    %377 = vector.broadcast %cst_132 : f32 to vector<8x1xf32>
    %378 = arith.subf %377, %366 : vector<8x1xf32>
    %379 = vector.broadcast %378 : vector<8x1xf32> to vector<8x32xf32>
    %380 = arith.mulf %379, %332 : vector<8x32xf32>
    %381 = arith.addf %376, %380 : vector<8x32xf32>
    %c0_133 = arith.constant 0 : index
    %c0_134 = arith.constant 0 : index
    %382 = vector.load %arg7[%c0_133, %c0_134] : memref<8x32xf32, #tpu.memory_space<vmem>>, vector<8x32xf32>
    tpu.vector_store %arg7[%c0_133, %c0_134], %381 {strides = array<i32>} : memref<8x32xf32, #tpu.memory_space<vmem>>, vector<8x32xf32>,
    %383 = vector.broadcast %366 : vector<8x1xf32> to vector<8x32xf32>
    %384 = arith.mulf %383, %362 : vector<8x32xf32>
    %c0_135 = arith.constant 0 : index
    %385 = arith.index_cast %329 : i32 to index
    %c0_136 = arith.constant 0 : index
    %c0_137 = arith.constant 0 : index
    %386 = vector.load %arg5[%c0_135, %385, %c0_136, %c0_137] : memref<1x8x8x32xf32, #tpu.memory_space<vmem>>, vector<1x1x8x32xf32>
    %387 = vector.shape_cast %386 : vector<1x1x8x32xf32> to vector<8x32xf32>
    %388 = vector.shape_cast %384 : vector<8x32xf32> to vector<1x1x8x32xf32>
    tpu.vector_store %arg5[%c0_135, %385, %c0_136, %c0_137], %388 {strides = array<i32>} : memref<1x8x8x32xf32, #tpu.memory_space<vmem>>, vector<1x1x8x32xf32>,
    %c6_i32 = arith.constant 6 : i32
    %c2_i32_138 = arith.constant 2 : i32
    %389 = arith.muli %c2_i32_138, %c6_i32 : i32
    %c7_i32_139 = arith.constant 7 : i32
    %390 = arith.subi %c7_i32_139, %389 : i32
    %391 = arith.muli %arg0, %390 : i32
    %392 = arith.addi %c6_i32, %391 : i32
    %393 = arith.addi %10, %392 : i32
    %c0_140 = arith.constant 0 : index
    %c0_141 = arith.constant 0 : index
    %394 = vector.load %arg6[%c0_140, %c0_141] : memref<8x32xf32, #tpu.memory_space<vmem>>, vector<8x32xf32>
    %c0_142 = arith.constant 0 : index
    %c0_143 = arith.constant 0 : index
    %395 = vector.load %arg7[%c0_142, %c0_143] : memref<8x32xf32, #tpu.memory_space<vmem>>, vector<8x32xf32>
    %c0_144 = arith.constant 0 : index
    %396 = arith.index_cast %392 : i32 to index
    %c0_145 = arith.constant 0 : index
    %c0_146 = arith.constant 0 : index
    %397 = vector.load %arg3[%c0_144, %396, %c0_145, %c0_146] : memref<1x8x8x128xf32, #tpu.memory_space<vmem>>, vector<1x1x8x128xf32>
    %398 = vector.shape_cast %397 : vector<1x1x8x128xf32> to vector<8x128xf32>
    %cst_147 = arith.constant dense<0.000000e+00> : vector<8x128xf32>
    %399 = tpu.matmul %394, %5, %cst_147 {dimension_numbers = #tpu.dot_dimension_numbers<[1], [0], [0], [1], [0, 0, 1, 1], [], []>} : vector<8x32xf32>, vector<32x128xf32>, vector<8x128xf32> -> vector<8x128xf32>
    %400 = arith.addf %398, %399 : vector<8x128xf32>
    %401 = vector.extract_strided_slice %400 {offsets = [0, 0], sizes = [8, 32], strides = [1, 1]} : vector<8x128xf32> to vector<8x32xf32>
    %402 = arith.negf %401 : vector<8x32xf32>
    %403 = math.exp %402 : vector<8x32xf32>
    %cst_148 = arith.constant 1.000000e+00 : f32
    %404 = vector.broadcast %cst_148 : f32 to vector<8x32xf32>
    %405 = arith.addf %404, %403 : vector<8x32xf32>
    %406 = arith.divf %404, %405 : vector<8x32xf32>
    %407 = vector.extract_strided_slice %400 {offsets = [0, 32], sizes = [8, 32], strides = [1, 1]} : vector<8x128xf32> to vector<8x32xf32>
    %408 = arith.negf %407 : vector<8x32xf32>
    %409 = math.exp %408 : vector<8x32xf32>
    %cst_149 = arith.constant 1.000000e+00 : f32
    %410 = vector.broadcast %cst_149 : f32 to vector<8x32xf32>
    %411 = arith.addf %410, %409 : vector<8x32xf32>
    %412 = arith.divf %410, %411 : vector<8x32xf32>
    %413 = vector.extract_strided_slice %400 {offsets = [0, 64], sizes = [8, 32], strides = [1, 1]} : vector<8x128xf32> to vector<8x32xf32>
    %414 = math.tanh %413 : vector<8x32xf32>
    %415 = vector.extract_strided_slice %400 {offsets = [0, 96], sizes = [8, 32], strides = [1, 1]} : vector<8x128xf32> to vector<8x32xf32>
    %416 = arith.negf %415 : vector<8x32xf32>
    %417 = math.exp %416 : vector<8x32xf32>
    %cst_150 = arith.constant 1.000000e+00 : f32
    %418 = vector.broadcast %cst_150 : f32 to vector<8x32xf32>
    %419 = arith.addf %418, %417 : vector<8x32xf32>
    %420 = arith.divf %418, %419 : vector<8x32xf32>
    %421 = arith.mulf %412, %395 : vector<8x32xf32>
    %422 = arith.mulf %406, %414 : vector<8x32xf32>
    %423 = arith.addf %421, %422 : vector<8x32xf32>
    %424 = math.tanh %423 : vector<8x32xf32>
    %425 = arith.mulf %420, %424 : vector<8x32xf32>
    %426 = vector.broadcast %393 : i32 to vector<8x1xi32>
    %427 = arith.cmpi slt, %426, %3 : vector<8x1xi32>
    %428 = arith.extui %427 : vector<8x1xi1> to vector<8x1xi32>
    %429 = arith.sitofp %428 : vector<8x1xi32> to vector<8x1xf32>
    %430 = vector.broadcast %429 : vector<8x1xf32> to vector<8x32xf32>
    %431 = arith.mulf %430, %425 : vector<8x32xf32>
    %cst_151 = arith.constant 1.000000e+00 : f32
    %432 = vector.broadcast %cst_151 : f32 to vector<8x1xf32>
    %433 = arith.subf %432, %429 : vector<8x1xf32>
    %434 = vector.broadcast %433 : vector<8x1xf32> to vector<8x32xf32>
    %435 = arith.mulf %434, %394 : vector<8x32xf32>
    %436 = arith.addf %431, %435 : vector<8x32xf32>
    %c0_152 = arith.constant 0 : index
    %c0_153 = arith.constant 0 : index
    %437 = vector.load %arg6[%c0_152, %c0_153] : memref<8x32xf32, #tpu.memory_space<vmem>>, vector<8x32xf32>
    tpu.vector_store %arg6[%c0_152, %c0_153], %436 {strides = array<i32>} : memref<8x32xf32, #tpu.memory_space<vmem>>, vector<8x32xf32>,
    %438 = vector.broadcast %429 : vector<8x1xf32> to vector<8x32xf32>
    %439 = arith.mulf %438, %423 : vector<8x32xf32>
    %cst_154 = arith.constant 1.000000e+00 : f32
    %440 = vector.broadcast %cst_154 : f32 to vector<8x1xf32>
    %441 = arith.subf %440, %429 : vector<8x1xf32>
    %442 = vector.broadcast %441 : vector<8x1xf32> to vector<8x32xf32>
    %443 = arith.mulf %442, %395 : vector<8x32xf32>
    %444 = arith.addf %439, %443 : vector<8x32xf32>
    %c0_155 = arith.constant 0 : index
    %c0_156 = arith.constant 0 : index
    %445 = vector.load %arg7[%c0_155, %c0_156] : memref<8x32xf32, #tpu.memory_space<vmem>>, vector<8x32xf32>
    tpu.vector_store %arg7[%c0_155, %c0_156], %444 {strides = array<i32>} : memref<8x32xf32, #tpu.memory_space<vmem>>, vector<8x32xf32>,
    %446 = vector.broadcast %429 : vector<8x1xf32> to vector<8x32xf32>
    %447 = arith.mulf %446, %425 : vector<8x32xf32>
    %c0_157 = arith.constant 0 : index
    %448 = arith.index_cast %392 : i32 to index
    %c0_158 = arith.constant 0 : index
    %c0_159 = arith.constant 0 : index
    %449 = vector.load %arg5[%c0_157, %448, %c0_158, %c0_159] : memref<1x8x8x32xf32, #tpu.memory_space<vmem>>, vector<1x1x8x32xf32>
    %450 = vector.shape_cast %449 : vector<1x1x8x32xf32> to vector<8x32xf32>
    %451 = vector.shape_cast %447 : vector<8x32xf32> to vector<1x1x8x32xf32>
    tpu.vector_store %arg5[%c0_157, %448, %c0_158, %c0_159], %451 {strides = array<i32>} : memref<1x8x8x32xf32, #tpu.memory_space<vmem>>, vector<1x1x8x32xf32>,
    %c7_i32_160 = arith.constant 7 : i32
    %c2_i32_161 = arith.constant 2 : i32
    %452 = arith.muli %c2_i32_161, %c7_i32_160 : i32
    %c7_i32_162 = arith.constant 7 : i32
    %453 = arith.subi %c7_i32_162, %452 : i32
    %454 = arith.muli %arg0, %453 : i32
    %455 = arith.addi %c7_i32_160, %454 : i32
    %456 = arith.addi %10, %455 : i32
    %c0_163 = arith.constant 0 : index
    %c0_164 = arith.constant 0 : index
    %457 = vector.load %arg6[%c0_163, %c0_164] : memref<8x32xf32, #tpu.memory_space<vmem>>, vector<8x32xf32>
    %c0_165 = arith.constant 0 : index
    %c0_166 = arith.constant 0 : index
    %458 = vector.load %arg7[%c0_165, %c0_166] : memref<8x32xf32, #tpu.memory_space<vmem>>, vector<8x32xf32>
    %c0_167 = arith.constant 0 : index
    %459 = arith.index_cast %455 : i32 to index
    %c0_168 = arith.constant 0 : index
    %c0_169 = arith.constant 0 : index
    %460 = vector.load %arg3[%c0_167, %459, %c0_168, %c0_169] : memref<1x8x8x128xf32, #tpu.memory_space<vmem>>, vector<1x1x8x128xf32>
    %461 = vector.shape_cast %460 : vector<1x1x8x128xf32> to vector<8x128xf32>
    %cst_170 = arith.constant dense<0.000000e+00> : vector<8x128xf32>
    %462 = tpu.matmul %457, %5, %cst_170 {dimension_numbers = #tpu.dot_dimension_numbers<[1], [0], [0], [1], [0, 0, 1, 1], [], []>} : vector<8x32xf32>, vector<32x128xf32>, vector<8x128xf32> -> vector<8x128xf32>
    %463 = arith.addf %461, %462 : vector<8x128xf32>
    %464 = vector.extract_strided_slice %463 {offsets = [0, 0], sizes = [8, 32], strides = [1, 1]} : vector<8x128xf32> to vector<8x32xf32>
    %465 = arith.negf %464 : vector<8x32xf32>
    %466 = math.exp %465 : vector<8x32xf32>
    %cst_171 = arith.constant 1.000000e+00 : f32
    %467 = vector.broadcast %cst_171 : f32 to vector<8x32xf32>
    %468 = arith.addf %467, %466 : vector<8x32xf32>
    %469 = arith.divf %467, %468 : vector<8x32xf32>
    %470 = vector.extract_strided_slice %463 {offsets = [0, 32], sizes = [8, 32], strides = [1, 1]} : vector<8x128xf32> to vector<8x32xf32>
    %471 = arith.negf %470 : vector<8x32xf32>
    %472 = math.exp %471 : vector<8x32xf32>
    %cst_172 = arith.constant 1.000000e+00 : f32
    %473 = vector.broadcast %cst_172 : f32 to vector<8x32xf32>
    %474 = arith.addf %473, %472 : vector<8x32xf32>
    %475 = arith.divf %473, %474 : vector<8x32xf32>
    %476 = vector.extract_strided_slice %463 {offsets = [0, 64], sizes = [8, 32], strides = [1, 1]} : vector<8x128xf32> to vector<8x32xf32>
    %477 = math.tanh %476 : vector<8x32xf32>
    %478 = vector.extract_strided_slice %463 {offsets = [0, 96], sizes = [8, 32], strides = [1, 1]} : vector<8x128xf32> to vector<8x32xf32>
    %479 = arith.negf %478 : vector<8x32xf32>
    %480 = math.exp %479 : vector<8x32xf32>
    %cst_173 = arith.constant 1.000000e+00 : f32
    %481 = vector.broadcast %cst_173 : f32 to vector<8x32xf32>
    %482 = arith.addf %481, %480 : vector<8x32xf32>
    %483 = arith.divf %481, %482 : vector<8x32xf32>
    %484 = arith.mulf %475, %458 : vector<8x32xf32>
    %485 = arith.mulf %469, %477 : vector<8x32xf32>
    %486 = arith.addf %484, %485 : vector<8x32xf32>
    %487 = math.tanh %486 : vector<8x32xf32>
    %488 = arith.mulf %483, %487 : vector<8x32xf32>
    %489 = vector.broadcast %456 : i32 to vector<8x1xi32>
    %490 = arith.cmpi slt, %489, %3 : vector<8x1xi32>
    %491 = arith.extui %490 : vector<8x1xi1> to vector<8x1xi32>
    %492 = arith.sitofp %491 : vector<8x1xi32> to vector<8x1xf32>
    %493 = vector.broadcast %492 : vector<8x1xf32> to vector<8x32xf32>
    %494 = arith.mulf %493, %488 : vector<8x32xf32>
    %cst_174 = arith.constant 1.000000e+00 : f32
    %495 = vector.broadcast %cst_174 : f32 to vector<8x1xf32>
    %496 = arith.subf %495, %492 : vector<8x1xf32>
    %497 = vector.broadcast %496 : vector<8x1xf32> to vector<8x32xf32>
    %498 = arith.mulf %497, %457 : vector<8x32xf32>
    %499 = arith.addf %494, %498 : vector<8x32xf32>
    %c0_175 = arith.constant 0 : index
    %c0_176 = arith.constant 0 : index
    %500 = vector.load %arg6[%c0_175, %c0_176] : memref<8x32xf32, #tpu.memory_space<vmem>>, vector<8x32xf32>
    tpu.vector_store %arg6[%c0_175, %c0_176], %499 {strides = array<i32>} : memref<8x32xf32, #tpu.memory_space<vmem>>, vector<8x32xf32>,
    %501 = vector.broadcast %492 : vector<8x1xf32> to vector<8x32xf32>
    %502 = arith.mulf %501, %486 : vector<8x32xf32>
    %cst_177 = arith.constant 1.000000e+00 : f32
    %503 = vector.broadcast %cst_177 : f32 to vector<8x1xf32>
    %504 = arith.subf %503, %492 : vector<8x1xf32>
    %505 = vector.broadcast %504 : vector<8x1xf32> to vector<8x32xf32>
    %506 = arith.mulf %505, %458 : vector<8x32xf32>
    %507 = arith.addf %502, %506 : vector<8x32xf32>
    %c0_178 = arith.constant 0 : index
    %c0_179 = arith.constant 0 : index
    %508 = vector.load %arg7[%c0_178, %c0_179] : memref<8x32xf32, #tpu.memory_space<vmem>>, vector<8x32xf32>
    tpu.vector_store %arg7[%c0_178, %c0_179], %507 {strides = array<i32>} : memref<8x32xf32, #tpu.memory_space<vmem>>, vector<8x32xf32>,
    %509 = vector.broadcast %492 : vector<8x1xf32> to vector<8x32xf32>
    %510 = arith.mulf %509, %488 : vector<8x32xf32>
    %c0_180 = arith.constant 0 : index
    %511 = arith.index_cast %455 : i32 to index
    %c0_181 = arith.constant 0 : index
    %c0_182 = arith.constant 0 : index
    %512 = vector.load %arg5[%c0_180, %511, %c0_181, %c0_182] : memref<1x8x8x32xf32, #tpu.memory_space<vmem>>, vector<1x1x8x32xf32>
    %513 = vector.shape_cast %512 : vector<1x1x8x32xf32> to vector<8x32xf32>
    %514 = vector.shape_cast %510 : vector<8x32xf32> to vector<1x1x8x32xf32>
    tpu.vector_store %arg5[%c0_180, %511, %c0_181, %c0_182], %514 {strides = array<i32>} : memref<1x8x8x32xf32, #tpu.memory_space<vmem>>, vector<1x1x8x32xf32>,
    %c8_i32_183 = arith.constant 8 : i32
    return
  }
  func.func @transform_0(%arg0: i32, %arg1: i32) -> (i32, i32) {
    %c0_i32 = arith.constant 0 : i32
    %c0_i32_0 = arith.constant 0 : i32
    %c0_i32_1 = arith.constant 0 : i32
    return %c0_i32, %c0_i32_0 : i32, i32
  }
  func.func @transform_1(%arg0: i32, %arg1: i32) -> (i32, i32, i32, i32) {
    %c2_i32 = arith.constant 2 : i32
    %0 = arith.muli %c2_i32, %arg1 : i32
    %c1_i32 = arith.constant 1 : i32
    %1 = arith.subi %c1_i32, %0 : i32
    %2 = arith.muli %arg0, %1 : i32
    %3 = arith.addi %arg1, %2 : i32
    %c0_i32 = arith.constant 0 : i32
    %c0_i32_0 = arith.constant 0 : i32
    %c0_i32_1 = arith.constant 0 : i32
    return %arg0, %3, %c0_i32, %c0_i32_0 : i32, i32, i32, i32
  }
  func.func @transform_2(%arg0: i32, %arg1: i32) -> (i32, i32, i32) {
    %c0_i32 = arith.constant 0 : i32
    %c0_i32_0 = arith.constant 0 : i32
    %c0_i32_1 = arith.constant 0 : i32
    return %arg0, %c0_i32, %c0_i32_0 : i32, i32, i32
  }
  func.func @transform_3(%arg0: i32, %arg1: i32) -> (i32, i32, i32, i32) {
    %c2_i32 = arith.constant 2 : i32
    %0 = arith.muli %c2_i32, %arg1 : i32
    %c1_i32 = arith.constant 1 : i32
    %1 = arith.subi %c1_i32, %0 : i32
    %2 = arith.muli %arg0, %1 : i32
    %3 = arith.addi %arg1, %2 : i32
    %c0_i32 = arith.constant 0 : i32
    %c0_i32_0 = arith.constant 0 : i32
    %c0_i32_1 = arith.constant 0 : i32
    return %arg0, %3, %c0_i32, %c0_i32_0 : i32, i32, i32, i32
  }
}

</mosaic_0001>

<llo_original>
// kernel: rnn_encoder_forward.2
$region0: #{rnn_encoder_forward.2}
  #allocation0 [shape = 'u32[]', space=smem, size = 0x4, offset = 0x4, fixed_abs, tag = 'smem constant byte address 0x4 - core index']
  #allocation1 [shape = 'u32[72,128]{1,0:T(1,128)}', space=vmem, size = 0x9000, scoped, tag = 'internal scratch']
  #allocation2 [shape = 'f32[8,32]{1,0:T(8,128)}', space=vmem, size = 0x1000, scoped, tag = 'scratch operand']
  #allocation3 [shape = 'f32[8,32]{1,0:T(8,128)}', space=vmem, size = 0x1000, scoped, tag = 'scratch operand']
  %s0 = inlined_call_operand.vmem [shape: s32[8,1], index: 0, kind: input, shape index: {}]
  %s1 = inlined_call_operand.vmem [shape: f32[2,16,8,128], index: 1, kind: input, shape index: {}]
  %s2 = inlined_call_operand.vmem [shape: f32[2,32,128], index: 2, kind: input, shape index: {}]
  %s3 = inlined_call_operand.vmem [shape: f32[2,16,8,32], index: 3, kind: output, shape index: {}]
  %s4 = sld [smem:[#allocation0]]
  $region49: #{rnn_encoder_forward.2} parent=0
    _
  %s6 = ssub.s32 1, %s4
  %s7 = scalar_select 0, %s6, %s4
  loop: start=0, step=1, limit=6
  $region2: #{rnn_encoder_forward.2} parent=0 // loop_pre_header
    _
  $region3: #{rnn_encoder_forward.2} parent=0 // loop_header
    %s9 = sphi 0, %s13
    %p10 = scmp.ge.s32.totalorder %s9, 6
    %s16 = sphi 0, %s28
    %s17 = sphi 0, %s24
    %s18 = sphi 0, %s16
    %s19 = sphi 0, %s17
    %s20 = sphi 0, %s18
    %s21 = sphi 0, %s19
    %s29 = sphi 0, %s29
    %s31 = sphi 0, %s29
    %s32 = sphi 0, %s31
    %s46 = sphi 0, %s32
    %s62 = sphi 0, %s64
    %s65 = sphi 0, %s62
    %s66 = sphi 0, %s65
    %s82 = sphi 0, %s66
    %s88 = sphi 0, %s90
    %s91 = sphi 0, %s88
    %s92 = sphi 0, %s91
    %s108 = sphi 0, %s92
    %s124 = sphi 0, %s126
    %s127 = sphi 0, %s124
    %s128 = sphi 0, %s127
    %s144 = sphi 0, %s128
  $region4: #{rnn_encoder_forward.2} parent=0 // loop_header_branch
    %12 = sbr.rel (%p10) target = $region8
  $region5: #{rnn_encoder_forward.2} parent=0 // loop_body
    %s14 = ssub.s32 %s9, 1
    %s15 = ssub.s32 %s9, 2
    %s22 = sadd.s32 1, %s17
    %p23 = scmp.ge.s32.totalorder %s22, 2
    %s24 = scalar_select %p23, 0, %s22
    %s25 = sadd.s32 1, %s16
    %s26 = scalar_select %p23, %s25, %s16
    %p27 = scmp.ge.s32.totalorder %s26, 2
    %s28 = scalar_select %p27, 0, %s26
    %s30 = sadd.s32 %s29, 1
    %p33 = scmp.eq.s32.totalorder %s9, 3
    %p34 = scmp.ne.s32.totalorder %s29, %s31
    %p35 = scmp.eq.s32.totalorder %s9, 0
    %p36 = por %p34, %p35
    %p37 = scmp.ne.s32.totalorder %s29, %s31
    %p38 = scmp.eq.s32.totalorder %s14, 3
    %p39 = por %p37, %p38
    %p40 = scmp.ne.s32.totalorder %s31, %s32
    %p41 = scmp.eq.s32.totalorder %s14, 0
    %p42 = por %p40, %p41
    %p43 = scmp.ne.s32.totalorder %s31, %s32
    %p44 = scmp.eq.s32.totalorder %s15, 3
    %p45 = por %p43, %p44
    %p47 = scmp.ne.s32.totalorder %s32, %s46
    %p48 = scmp.eq.s32.totalorder %s15, 0
    %p49 = por %p47, %p48
    %s50 = smul.u32 %s17, 2
    %s51 = ssub.s32 1, %s50
    %s52 = smul.u32 %s16, %s51
    %s53 = sadd.s32 %s17, %s52
    %s54 = smul.u32 %s24, 2
    %s55 = ssub.s32 1, %s54
    %s56 = smul.u32 %s28, %s55
    %s57 = sadd.s32 %s24, %s56
    %s58 = ssub.s32 %s16, %s28
    %s59 = ssub.s32 %s53, %s57
    %s60 = sor.u32 %s58, %s59
    %p61 = scmp.eq.s32.totalorder %s60, 0
    %s63 = sadd.s32 %s62, 1
    %s64 = scalar_select %p61, %s62, %s63
    %p67 = pneg %p61
    %p68 = scmp.eq.s32.totalorder %s9, 3
    %p69 = por %p67, %p68
    %p70 = scmp.ne.s32.totalorder %s62, %s65
    %p71 = scmp.eq.s32.totalorder %s9, 0
    %p72 = por %p70, %p71
    %p73 = scmp.ne.s32.totalorder %s62, %s65
    %p74 = scmp.eq.s32.totalorder %s14, 3
    %p75 = por %p73, %p74
    %p76 = scmp.ne.s32.totalorder %s65, %s66
    %p77 = scmp.eq.s32.totalorder %s14, 0
    %p78 = por %p76, %p77
    %p79 = scmp.ne.s32.totalorder %s65, %s66
    %p80 = scmp.eq.s32.totalorder %s15, 3
    %p81 = por %p79, %p80
    %p83 = scmp.ne.s32.totalorder %s66, %s82
    %p84 = scmp.eq.s32.totalorder %s15, 0
    %p85 = por %p83, %p84
    %s86 = ssub.s32 %s16, %s28
    %p87 = scmp.eq.s32.totalorder %s86, 0
    %s89 = sadd.s32 %s88, 1
    %s90 = scalar_select %p87, %s88, %s89
    %p93 = pneg %p87
    %p94 = scmp.eq.s32.totalorder %s9, 3
    %p95 = por %p93, %p94
    %p96 = scmp.ne.s32.totalorder %s88, %s91
    %p97 = scmp.eq.s32.totalorder %s9, 0
    %p98 = por %p96, %p97
    %p99 = scmp.ne.s32.totalorder %s88, %s91
    %p100 = scmp.eq.s32.totalorder %s14, 3
    %p101 = por %p99, %p100
    %p102 = scmp.ne.s32.totalorder %s91, %s92
    %p103 = scmp.eq.s32.totalorder %s14, 0
    %p104 = por %p102, %p103
    %p105 = scmp.ne.s32.totalorder %s91, %s92
    %p106 = scmp.eq.s32.totalorder %s15, 3
    %p107 = por %p105, %p106
    %p109 = scmp.ne.s32.totalorder %s92, %s108
    %p110 = scmp.eq.s32.totalorder %s15, 0
    %p111 = por %p109, %p110
    %s112 = smul.u32 %s17, 2
    %s113 = ssub.s32 1, %s112
    %s114 = smul.u32 %s16, %s113
    %s115 = sadd.s32 %s17, %s114
    %s116 = smul.u32 %s24, 2
    %s117 = ssub.s32 1, %s116
    %s118 = smul.u32 %s28, %s117
    %s119 = sadd.s32 %s24, %s118
    %s120 = ssub.s32 %s16, %s28
    %s121 = ssub.s32 %s115, %s119
    %s122 = sor.u32 %s120, %s121
    %p123 = scmp.eq.s32.totalorder %s122, 0
    %s125 = sadd.s32 %s124, 1
    %s126 = scalar_select %p123, %s124, %s125
    %p129 = pneg %p123
    %p130 = scmp.eq.s32.totalorder %s9, 3
    %p131 = por %p129, %p130
    %p132 = scmp.ne.s32.totalorder %s124, %s127
    %p133 = scmp.eq.s32.totalorder %s9, 0
    %p134 = por %p132, %p133
    %p135 = scmp.ne.s32.totalorder %s124, %s127
    %p136 = scmp.eq.s32.totalorder %s14, 3
    %p137 = por %p135, %p136
    %p138 = scmp.ne.s32.totalorder %s127, %s128
    %p139 = scmp.eq.s32.totalorder %s14, 0
    %p140 = por %p138, %p139
    %p141 = scmp.ne.s32.totalorder %s127, %s128
    %p142 = scmp.eq.s32.totalorder %s15, 3
    %p143 = por %p141, %p142
    %p145 = scmp.ne.s32.totalorder %s128, %s144
    %p146 = scmp.eq.s32.totalorder %s15, 0
    %p147 = por %p145, %p146
    %p148 = scmp.le.s32.totalorder 1, %s9
    %p149 = scmp.lt.s32.totalorder %s9, 5
    %p150 = pnand %p148, %p149
    %p151 = pneg %p150
    // Predicated region
    $region9: #{rnn_encoder_forward.2} parent=5 // pred_check
      _
    $region10: #{rnn_encoder_forward.2} parent=5 // pred_check_branch
      %153 = sbr.rel (%p150) target = $region12
    $region11: #{rnn_encoder_forward.2} parent=5 // pred_region
      %s154 = ssub.s32 %s9, 1
      // Predicated region
      $region13: #{rnn_encoder_forward.2} parent=11 // pred_check
        %p155 = pneg %p42
      $region14: #{rnn_encoder_forward.2} parent=11 // pred_check_branch
        %157 = sbr.rel (%p155) target = $region16
      $region15: #{rnn_encoder_forward.2} parent=11 // pred_region
        _
      $region16: #{rnn_encoder_forward.2} parent=11 // pred_fallthru
        _
    $region12: #{rnn_encoder_forward.2} parent=5 // pred_fallthru
      _
    %p158 = scmp.lt.s32.totalorder %s9, 4
    // Predicated region
    $region17: #{rnn_encoder_forward.2} parent=5 // pred_check
      %p159 = pneg %p158
    $region18: #{rnn_encoder_forward.2} parent=5 // pred_check_branch
      %161 = sbr.rel (%p159) target = $region20
    $region19: #{rnn_encoder_forward.2} parent=5 // pred_region
      // Predicated region
      $region21: #{rnn_encoder_forward.2} parent=19 // pred_check
        %p162 = pneg %p72
      $region22: #{rnn_encoder_forward.2} parent=19 // pred_check_branch
        %164 = sbr.rel (%p162) target = $region24
      $region23: #{rnn_encoder_forward.2} parent=19 // pred_region
        %s165 = smul.u32 %s17, 2
        %s166 = ssub.s32 1, %s165
        %s167 = smul.u32 %s16, %s166
        %s168 = sadd.s32 %s17, %s167
        %s169 = smul.u32 8, %s168
        %p170 = scmp.lt.s32.totalorder %s16, 1
        %s171 = scalar_select %p170, %s16, 1
        %p172 = scmp.lt.s32.totalorder %s169, 15
        %s173 = scalar_select %p172, %s169, 15
        %s174 = smul.addr %s171, 16
        %s175 = sadd.s32 %s173, %s174
        %s176 = smul.addr %s175, 8
        %s177 = scalar_lea.vmem %s1, %s176
        %s178 = smul.u32 %s17, 2
        %s179 = ssub.s32 1, %s178
        %s180 = smul.u32 %s16, %s179
        %s181 = sadd.s32 %s17, %s180
        %s182 = smul.u32 8, %s181
      $region24: #{rnn_encoder_forward.2} parent=19 // pred_fallthru
        _
      // Predicated region
      $region25: #{rnn_encoder_forward.2} parent=19 // pred_check
        %p183 = pneg %p98
      $region26: #{rnn_encoder_forward.2} parent=19 // pred_check_branch
        %185 = sbr.rel (%p183) target = $region28
      $region27: #{rnn_encoder_forward.2} parent=19 // pred_region
        %p186 = scmp.lt.s32.totalorder %s16, 1
        %s187 = scalar_select %p186, %s16, 1
        %s188 = smul.addr %s187, 4
        %s189 = smul.addr %s188, 8
        %s190 = scalar_lea.vmem %s2, %s189
      $region28: #{rnn_encoder_forward.2} parent=19 // pred_fallthru
        _
    $region20: #{rnn_encoder_forward.2} parent=5 // pred_fallthru
      _
    %p191 = scmp.le.s32.totalorder 1, %s9
    %p192 = scmp.lt.s32.totalorder %s9, 5
    %p193 = pnand %p191, %p192
    %p194 = pneg %p193
    // Predicated region
    $region29: #{rnn_encoder_forward.2} parent=5 // pred_check
      _
    $region30: #{rnn_encoder_forward.2} parent=5 // pred_check_branch
      %196 = sbr.rel (%p193) target = $region32
    $region31: #{rnn_encoder_forward.2} parent=5 // pred_region
      %s197 = ssub.s32 %s9, 1
      %p198 = pneg %p42
      %p199 = pneg %p39
      %s200 = smul.u32 %s19, 2
      %s201 = ssub.s32 1, %s200
      %s202 = smul.u32 %s18, %s201
      %s203 = sadd.s32 %s19, %s202
      %s204 = smul.u32 8, %s203
      %p205 = scmp.lt.s32.totalorder %s18, 1
      %s206 = scalar_select %p205, %s18, 1
      %p207 = scmp.lt.s32.totalorder %s204, 15
      %s208 = scalar_select %p207, %s204, 15
      %s209 = smul.addr %s206, 16
      %s210 = sadd.s32 %s208, %s209
      %s211 = smul.addr %s210, 8
      %s212 = scalar_lea.vmem %s1, %s211
      %p213 = pneg %p78
      %p214 = pneg %p75
      %p215 = scmp.lt.s32.totalorder %s18, 1
      %s216 = scalar_select %p215, %s18, 1
      %s217 = smul.addr %s216, 4
      %s218 = smul.addr %s217, 8
      %s219 = scalar_lea.vmem %s2, %s218
      %p220 = pneg %p104
      %p221 = pneg %p101
      %p222 = pneg %p140
      %p223 = pneg %p137
      %s224 = smul.u32 %s19, 2
      %s225 = ssub.s32 1, %s224
      %s226 = smul.u32 %s18, %s225
      %s227 = sadd.s32 %s19, %s226
      %s228 = smul.u32 8, %s227
      %p229 = scmp.lt.s32.totalorder %s18, 1
      %s230 = scalar_select %p229, %s18, 1
      %p231 = scmp.lt.s32.totalorder %s228, 15
      %s232 = scalar_select %p231, %s228, 15
      %s233 = smul.addr %s230, 16
      %s234 = sadd.s32 %s232, %s233
      %s235 = smul.addr %s234, 8
      %s236 = scalar_lea.vmem %s3, %s235
      %s237 = smul.u32 %s19, 2
      %s238 = ssub.s32 1, %s237
      %s239 = smul.u32 %s18, %s238
      %s240 = sadd.s32 %s19, %s239
      %s241 = smul.u32 8, %s240
      %p242 = scmp.lt.s32.totalorder %s18, 1
      %s243 = scalar_select %p242, %s18, 1
      %p244 = scmp.lt.s32.totalorder %s241, 15
      %s245 = scalar_select %p244, %s241, 15
      %s246 = smul.addr %s243, 16
      %s247 = sadd.s32 %s245, %s246
      %s248 = smul.addr %s247, 8
      %s249 = scalar_lea.vmem %s1, %s248
      %s250 = smul.u32 %s19, 2
      %s251 = ssub.s32 1, %s250
      %s252 = smul.u32 %s18, %s251
      %s253 = sadd.s32 %s19, %s252
      %s254 = smul.u32 8, %s253
      %p255 = scmp.lt.s32.totalorder %s18, 1
      %s256 = scalar_select %p255, %s18, 1
      %s257 = smul.addr %s256, 4
      %s258 = smul.addr %s257, 8
      %s259 = scalar_lea.vmem %s2, %s258
      %s260 = smul.u32 %s19, 2
      %s261 = ssub.s32 1, %s260
      %s262 = smul.u32 %s18, %s261
      %s263 = sadd.s32 %s19, %s262
      %s264 = smul.u32 8, %s263
      %p265 = scmp.lt.s32.totalorder %s18, 1
      %s266 = scalar_select %p265, %s18, 1
      %p267 = scmp.lt.s32.totalorder %s264, 15
      %s268 = scalar_select %p267, %s264, 15
      %s269 = smul.addr %s266, 16
      %s270 = sadd.s32 %s268, %s269
      %s271 = smul.addr %s270, 8
      %s272 = scalar_lea.vmem %s3, %s271
      %s273 = smul.u32 %s19, 2
      %s274 = ssub.s32 1, %s273
      %s275 = smul.u32 %s18, %s274
      %s276 = sadd.s32 %s19, %s275
      %s277 = smul.u32 8, %s276
      %p278 = scmp.eq.s32.totalorder %s19, 0
      // Predicated region
      $region33: #{rnn_encoder_forward.2} parent=31 // pred_check
        %p279 = pneg %p278
      $region34: #{rnn_encoder_forward.2} parent=31 // pred_check_branch
        %281 = sbr.rel (%p279) target = $region36
      $region35: #{rnn_encoder_forward.2} parent=31 // pred_region
        %vm282 = vcmask 261120
        %283 = vst.msk [vmem:[#allocation2] sm:$0xff] %vm282, 0.0
        %284 = vst.msk [vmem:[#allocation3] sm:$0xff] %vm282, 0.0
      $region36: #{rnn_encoder_forward.2} parent=31 // pred_fallthru
        _
      %v285 = vld [vmem:[%s0] sm:$0xff]
      %v286 = vld [vmem:[%s259] sm:$0xff]
      %v287 = vld [vmem:[%s259 + $0x8] sm:$0xff]
      %v288 = vld [vmem:[%s259 + $0x10] sm:$0xff]
      %v289 = vld [vmem:[%s259 + $0x18] sm:$0xff]
      %s290 = smul.u32 %s19, 2
      %s291 = ssub.s32 1, %s290
      %s292 = smul.u32 %s18, %s291
      %s293 = sadd.s32 %s19, %s292
      %s294 = smul.u32 %s293, 8
      %s295 = smul.u32 %s18, 7
      %s296 = sadd.s32 %s294, %s295
      %v297 = vld [vmem:[#allocation2] sm:$0xff]
      %v298 = vld [vmem:[#allocation3] sm:$0xff]
      %s299 = smul.u32 %s295, 8
      %s300 = scalar_lea.vmem %s249, %s299
      %v301 = vld [vmem:[%s300] sm:$0xff]
      %vm302 = vcmask 261120
      %v304 = vsel %vm302, %v297, 0
      %306 = vmatpush.msra.mxu0 0.0
      %307 = vmatpush.msra.mxu0 0.0
      %308 = vmatpush.msra.mxu0 0.0
      %309 = vmatpush.msra.mxu0 0.0
      %310 = vmatpush.msra.mxu0 0.0
      %311 = vmatpush.msra.mxu0 0.0
      %312 = vmatpush.msra.mxu0 0.0
      %313 = vmatpush.msra.mxu0 0.0
      %314 = vmatpush.msra.mxu0 0.0
      %315 = vmatpush.msra.mxu0 0.0
      %316 = vmatpush.msra.mxu0 0.0
      %317 = vmatpush.msra.mxu0 0.0
      %318 = vmatpush.msra.mxu0 %v289
      %319 = vmatpush.msra.mxu0 %v288
      %320 = vmatpush.msra.mxu0 %v287
      %321 = vmatpush.msra.mxu0 %v286
      %322 = vmatmul.f32.gmra.mxu0 %v304
      %v323 = vpop.f32.mrf.mxu0
      %v324 = vadd.f32 0.0, %v323
      %325 = vdwg.mxu0
      %v326 = vadd.f32 %v301, %v324
      %v327 = vxor.u32 %v326, 2147483648
      %v328 = vmul.f32 %v327, 1.442695
      %v329 = vpow.pop %v328
      %v330 = vadd.f32 %v329, 1.0
      %v331 = vrcp.pop %v330
      %v332 = vmul.f32 %v330, %v331
      %v333 = vsub.f32 1.0, %v332
      %v334 = vmul.f32 %v331, %v333
      %v335 = vadd.f32 %v331, %v334
      %vm336 = vweird.f32 %v330
      %vm337 = vweird.f32 %v331
      %vm338 = vmor %vm336, %vm337
      %v339 = vsel %vm338, %v331, %v335
      %v340 = vand.u32 2147483647, %v330
      %vm341 = vcmp.eq.f32.partialorder %v340, 8.507059e+37
      %v342 = vand.u32 %v330, 2147483648
      %v343 = vor.u32 1.1754944e-38, %v342
      %v344 = vsel %vm341, %v343, %v339
      %v345 = vmul.f32 1.0, %v344
      %v346 = vtanh.pop %v326
      %348 = vrot.lane.b32.xlu0 %v298, 32
      %v349 = vpop.permute.xlu0 %348
      %v351 = vmul.f32 %v345, %v349
      %353 = vrot.lane.b32.xlu0 %v346, 64
      %v354 = vpop.permute.xlu0 %353
      %v356 = vmul.f32 %v345, %v354
      %358 = vrot.lane.b32.xlu0 %v356, 32
      %v359 = vpop.permute.xlu0 %358
      %v361 = vadd.f32 %v351, %v359
      %v362 = vtanh.pop %v361
      %364 = vrot.lane.b32.xlu0 %v362, 64
      %v365 = vpop.permute.xlu0 %364
      %v367 = vmul.f32 %v345, %v365
      %v368 = vstv %s296
      %vm369 = vcmp.lt.s32.totalorder %v368, %v285
      %v370 = vsel %vm369, 1, 0
      %v371 = vcvt.s32.f32 %v370
      %373 = vset.pattern.permute.xlu0 0
      %374 = vperm.xlu0 %373, %v371
      %v375 = vpop.permute.xlu0 %374
      %v377 = vmul.f32 %v375, %v367
      %v378 = vsub.f32 1.0, %v371
      %380 = vset.pattern.permute.xlu0 0
      %381 = vperm.xlu0 %380, %v378
      %v382 = vpop.permute.xlu0 %381
      %v384 = vmul.f32 %v382, %v297
      %386 = vrot.lane.b32.xlu0 %v384, 96
      %v387 = vpop.permute.xlu0 %386
      %v389 = vadd.f32 %v377, %v387
      %391 = vrot.lane.b32.xlu0 %v389, 32
      %v392 = vpop.permute.xlu0 %391
      %394 = vst.msk [vmem:[#allocation2] sm:$0xff] %vm302, %v392
      %v395 = vmul.f32 %v375, %v361
      %v396 = vmul.f32 %v382, %v298
      %398 = vrot.lane.b32.xlu0 %v396, 32
      %v399 = vpop.permute.xlu0 %398
      %v401 = vadd.f32 %v395, %v399
      %403 = vrot.lane.b32.xlu0 %v401, 96
      %v404 = vpop.permute.xlu0 %403
      %406 = vst.msk [vmem:[#allocation3] sm:$0xff] %vm302, %v404
      %408 = vrot.lane.b32.xlu0 %v377, 32
      %v409 = vpop.permute.xlu0 %408
      %s411 = scalar_lea.vmem %s272, %s299
      %412 = vst.msk [vmem:[%s411] sm:$0xff] %vm302, %v409
      %s413 = smul.u32 %s18, 5
      %s414 = sadd.s32 %s413, 1
      %s415 = sadd.s32 %s294, %s414
      %v416 = vld [vmem:[#allocation2] sm:$0xff]
      %v417 = vld [vmem:[#allocation3] sm:$0xff]
      %s418 = smul.u32 %s414, 8
      %s419 = scalar_lea.vmem %s249, %s418
      %v420 = vld [vmem:[%s419] sm:$0xff]
      %v422 = vsel %vm302, %v416, 0
      %424 = vmatpush.msra.mxu0 0.0
      %425 = vmatpush.msra.mxu0 0.0
      %426 = vmatpush.msra.mxu0 0.0
      %427 = vmatpush.msra.mxu0 0.0
      %428 = vmatpush.msra.mxu0 0.0
      %429 = vmatpush.msra.mxu0 0.0
      %430 = vmatpush.msra.mxu0 0.0
      %431 = vmatpush.msra.mxu0 0.0
      %432 = vmatpush.msra.mxu0 0.0
      %433 = vmatpush.msra.mxu0 0.0
      %434 = vmatpush.msra.mxu0 0.0
      %435 = vmatpush.msra.mxu0 0.0
      %436 = vmatpush.msra.mxu0 %v289
      %437 = vmatpush.msra.mxu0 %v288
      %438 = vmatpush.msra.mxu0 %v287
      %439 = vmatpush.msra.mxu0 %v286
      %440 = vmatmul.f32.gmra.mxu0 %v422
      %v441 = vpop.f32.mrf.mxu0
      %v442 = vadd.f32 0.0, %v441
      %443 = vdwg.mxu0
      %v444 = vadd.f32 %v420, %v442
      %v445 = vxor.u32 %v444, 2147483648
      %v446 = vmul.f32 %v445, 1.442695
      %v447 = vpow.pop %v446
      %v448 = vadd.f32 %v447, 1.0
      %v449 = vrcp.pop %v448
      %v450 = vmul.f32 %v448, %v449
      %v451 = vsub.f32 1.0, %v450
      %v452 = vmul.f32 %v449, %v451
      %v453 = vadd.f32 %v449, %v452
      %vm454 = vweird.f32 %v448
      %vm455 = vweird.f32 %v449
      %vm456 = vmor %vm454, %vm455
      %v457 = vsel %vm456, %v449, %v453
      %v458 = vand.u32 2147483647, %v448
      %vm459 = vcmp.eq.f32.partialorder %v458, 8.507059e+37
      %v460 = vand.u32 %v448, 2147483648
      %v461 = vor.u32 1.1754944e-38, %v460
      %v462 = vsel %vm459, %v461, %v457
      %v463 = vmul.f32 1.0, %v462
      %v464 = vtanh.pop %v444
      %466 = vrot.lane.b32.xlu0 %v417, 32
      %v467 = vpop.permute.xlu0 %466
      %v469 = vmul.f32 %v463, %v467
      %471 = vrot.lane.b32.xlu0 %v464, 64
      %v472 = vpop.permute.xlu0 %471
      %v474 = vmul.f32 %v463, %v472
      %476 = vrot.lane.b32.xlu0 %v474, 32
      %v477 = vpop.permute.xlu0 %476
      %v479 = vadd.f32 %v469, %v477
      %v480 = vtanh.pop %v479
      %482 = vrot.lane.b32.xlu0 %v480, 64
      %v483 = vpop.permute.xlu0 %482
      %v485 = vmul.f32 %v463, %v483
      %v486 = vstv %s415
      %vm487 = vcmp.lt.s32.totalorder %v486, %v285
      %v488 = vsel %vm487, 1, 0
      %v489 = vcvt.s32.f32 %v488
      %491 = vset.pattern.permute.xlu0 0
      %492 = vperm.xlu0 %491, %v489
      %v493 = vpop.permute.xlu0 %492
      %v495 = vmul.f32 %v493, %v485
      %v496 = vsub.f32 1.0, %v489
      %498 = vset.pattern.permute.xlu0 0
      %499 = vperm.xlu0 %498, %v496
      %v500 = vpop.permute.xlu0 %499
      %v502 = vmul.f32 %v500, %v416
      %504 = vrot.lane.b32.xlu0 %v502, 96
      %v505 = vpop.permute.xlu0 %504
      %v507 = vadd.f32 %v495, %v505
      %509 = vrot.lane.b32.xlu0 %v507, 32
      %v510 = vpop.permute.xlu0 %509
      %512 = vst.msk [vmem:[#allocation2] sm:$0xff] %vm302, %v510
      %v513 = vmul.f32 %v493, %v479
      %v514 = vmul.f32 %v500, %v417
      %516 = vrot.lane.b32.xlu0 %v514, 32
      %v517 = vpop.permute.xlu0 %516
      %v519 = vadd.f32 %v513, %v517
      %521 = vrot.lane.b32.xlu0 %v519, 96
      %v522 = vpop.permute.xlu0 %521
      %524 = vst.msk [vmem:[#allocation3] sm:$0xff] %vm302, %v522
      %526 = vrot.lane.b32.xlu0 %v495, 32
      %v527 = vpop.permute.xlu0 %526
      %s529 = scalar_lea.vmem %s272, %s418
      %530 = vst.msk [vmem:[%s529] sm:$0xff] %vm302, %v527
      %s531 = smul.u32 %s18, 3
      %s532 = sadd.s32 %s531, 2
      %s533 = sadd.s32 %s294, %s532
      %v534 = vld [vmem:[#allocation2] sm:$0xff]
      %v535 = vld [vmem:[#allocation3] sm:$0xff]
      %s536 = smul.u32 %s532, 8
      %s537 = scalar_lea.vmem %s249, %s536
      %v538 = vld [vmem:[%s537] sm:$0xff]
      %v540 = vsel %vm302, %v534, 0
      %542 = vmatpush.msra.mxu0 0.0
      %543 = vmatpush.msra.mxu0 0.0
      %544 = vmatpush.msra.mxu0 0.0
      %545 = vmatpush.msra.mxu0 0.0
      %546 = vmatpush.msra.mxu0 0.0
      %547 = vmatpush.msra.mxu0 0.0
      %548 = vmatpush.msra.mxu0 0.0
      %549 = vmatpush.msra.mxu0 0.0
      %550 = vmatpush.msra.mxu0 0.0
      %551 = vmatpush.msra.mxu0 0.0
      %552 = vmatpush.msra.mxu0 0.0
      %553 = vmatpush.msra.mxu0 0.0
      %554 = vmatpush.msra.mxu0 %v289
      %555 = vmatpush.msra.mxu0 %v288
      %556 = vmatpush.msra.mxu0 %v287
      %557 = vmatpush.msra.mxu0 %v286
      %558 = vmatmul.f32.gmra.mxu0 %v540
      %v559 = vpop.f32.mrf.mxu0
      %v560 = vadd.f32 0.0, %v559
      %561 = vdwg.mxu0
      %v562 = vadd.f32 %v538, %v560
      %v563 = vxor.u32 %v562, 2147483648
      %v564 = vmul.f32 %v563, 1.442695
      %v565 = vpow.pop %v564
      %v566 = vadd.f32 %v565, 1.0
      %v567 = vrcp.pop %v566
      %v568 = vmul.f32 %v566, %v567
      %v569 = vsub.f32 1.0, %v568
      %v570 = vmul.f32 %v567, %v569
      %v571 = vadd.f32 %v567, %v570
      %vm572 = vweird.f32 %v566
      %vm573 = vweird.f32 %v567
      %vm574 = vmor %vm572, %vm573
      %v575 = vsel %vm574, %v567, %v571
      %v576 = vand.u32 2147483647, %v566
      %vm577 = vcmp.eq.f32.partialorder %v576, 8.507059e+37
      %v578 = vand.u32 %v566, 2147483648
      %v579 = vor.u32 1.1754944e-38, %v578
      %v580 = vsel %vm577, %v579, %v575
      %v581 = vmul.f32 1.0, %v580
      %v582 = vtanh.pop %v562
      %584 = vrot.lane.b32.xlu0 %v535, 32
      %v585 = vpop.permute.xlu0 %584
      %v587 = vmul.f32 %v581, %v585
      %589 = vrot.lane.b32.xlu0 %v582, 64
      %v590 = vpop.permute.xlu0 %589
      %v592 = vmul.f32 %v581, %v590
      %594 = vrot.lane.b32.xlu0 %v592, 32
      %v595 = vpop.permute.xlu0 %594
      %v597 = vadd.f32 %v587, %v595
      %v598 = vtanh.pop %v597
      %600 = vrot.lane.b32.xlu0 %v598, 64
      %v601 = vpop.permute.xlu0 %600
      %v603 = vmul.f32 %v581, %v601
      %v604 = vstv %s533
      %vm605 = vcmp.lt.s32.totalorder %v604, %v285
      %v606 = vsel %vm605, 1, 0
      %v607 = vcvt.s32.f32 %v606
      %609 = vset.pattern.permute.xlu0 0
      %610 = vperm.xlu0 %609, %v607
      %v611 = vpop.permute.xlu0 %610
      %v613 = vmul.f32 %v611, %v603
      %v614 = vsub.f32 1.0, %v607
      %616 = vset.pattern.permute.xlu0 0
      %617 = vperm.xlu0 %616, %v614
      %v618 = vpop.permute.xlu0 %617
      %v620 = vmul.f32 %v618, %v534
      %622 = vrot.lane.b32.xlu0 %v620, 96
      %v623 = vpop.permute.xlu0 %622
      %v625 = vadd.f32 %v613, %v623
      %627 = vrot.lane.b32.xlu0 %v625, 32
      %v628 = vpop.permute.xlu0 %627
      %630 = vst.msk [vmem:[#allocation2] sm:$0xff] %vm302, %v628
      %v631 = vmul.f32 %v611, %v597
      %v632 = vmul.f32 %v618, %v535
      %634 = vrot.lane.b32.xlu0 %v632, 32
      %v635 = vpop.permute.xlu0 %634
      %v637 = vadd.f32 %v631, %v635
      %639 = vrot.lane.b32.xlu0 %v637, 96
      %v640 = vpop.permute.xlu0 %639
      %642 = vst.msk [vmem:[#allocation3] sm:$0xff] %vm302, %v640
      %644 = vrot.lane.b32.xlu0 %v613, 32
      %v645 = vpop.permute.xlu0 %644
      %s647 = scalar_lea.vmem %s272, %s536
      %648 = vst.msk [vmem:[%s647] sm:$0xff] %vm302, %v645
      %s649 = sadd.s32 %s18, 3
      %s650 = sadd.s32 %s294, %s649
      %v651 = vld [vmem:[#allocation2] sm:$0xff]
      %v652 = vld [vmem:[#allocation3] sm:$0xff]
      %s653 = smul.u32 %s649, 8
      %s654 = scalar_lea.vmem %s249, %s653
      %v655 = vld [vmem:[%s654] sm:$0xff]
      %v657 = vsel %vm302, %v651, 0
      %659 = vmatpush.msra.mxu0 0.0
      %660 = vmatpush.msra.mxu0 0.0
      %661 = vmatpush.msra.mxu0 0.0
      %662 = vmatpush.msra.mxu0 0.0
      %663 = vmatpush.msra.mxu0 0.0
      %664 = vmatpush.msra.mxu0 0.0
      %665 = vmatpush.msra.mxu0 0.0
      %666 = vmatpush.msra.mxu0 0.0
      %667 = vmatpush.msra.mxu0 0.0
      %668 = vmatpush.msra.mxu0 0.0
      %669 = vmatpush.msra.mxu0 0.0
      %670 = vmatpush.msra.mxu0 0.0
      %671 = vmatpush.msra.mxu0 %v289
      %672 = vmatpush.msra.mxu0 %v288
      %673 = vmatpush.msra.mxu0 %v287
      %674 = vmatpush.msra.mxu0 %v286
      %675 = vmatmul.f32.gmra.mxu0 %v657
      %v676 = vpop.f32.mrf.mxu0
      %v677 = vadd.f32 0.0, %v676
      %678 = vdwg.mxu0
      %v679 = vadd.f32 %v655, %v677
      %v680 = vxor.u32 %v679, 2147483648
      %v681 = vmul.f32 %v680, 1.442695
      %v682 = vpow.pop %v681
      %v683 = vadd.f32 %v682, 1.0
      %v684 = vrcp.pop %v683
      %v685 = vmul.f32 %v683, %v684
      %v686 = vsub.f32 1.0, %v685
      %v687 = vmul.f32 %v684, %v686
      %v688 = vadd.f32 %v684, %v687
      %vm689 = vweird.f32 %v683
      %vm690 = vweird.f32 %v684
      %vm691 = vmor %vm689, %vm690
      %v692 = vsel %vm691, %v684, %v688
      %v693 = vand.u32 2147483647, %v683
      %vm694 = vcmp.eq.f32.partialorder %v693, 8.507059e+37
      %v695 = vand.u32 %v683, 2147483648
      %v696 = vor.u32 1.1754944e-38, %v695
      %v697 = vsel %vm694, %v696, %v692
      %v698 = vmul.f32 1.0, %v697
      %v699 = vtanh.pop %v679
      %701 = vrot.lane.b32.xlu0 %v652, 32
      %v702 = vpop.permute.xlu0 %701
      %v704 = vmul.f32 %v698, %v702
      %706 = vrot.lane.b32.xlu0 %v699, 64
      %v707 = vpop.permute.xlu0 %706
      %v709 = vmul.f32 %v698, %v707
      %711 = vrot.lane.b32.xlu0 %v709, 32
      %v712 = vpop.permute.xlu0 %711
      %v714 = vadd.f32 %v704, %v712
      %v715 = vtanh.pop %v714
      %717 = vrot.lane.b32.xlu0 %v715, 64
      %v718 = vpop.permute.xlu0 %717
      %v720 = vmul.f32 %v698, %v718
      %v721 = vstv %s650
      %vm722 = vcmp.lt.s32.totalorder %v721, %v285
      %v723 = vsel %vm722, 1, 0
      %v724 = vcvt.s32.f32 %v723
      %726 = vset.pattern.permute.xlu0 0
      %727 = vperm.xlu0 %726, %v724
      %v728 = vpop.permute.xlu0 %727
      %v730 = vmul.f32 %v728, %v720
      %v731 = vsub.f32 1.0, %v724
      %733 = vset.pattern.permute.xlu0 0
      %734 = vperm.xlu0 %733, %v731
      %v735 = vpop.permute.xlu0 %734
      %v737 = vmul.f32 %v735, %v651
      %739 = vrot.lane.b32.xlu0 %v737, 96
      %v740 = vpop.permute.xlu0 %739
      %v742 = vadd.f32 %v730, %v740
      %744 = vrot.lane.b32.xlu0 %v742, 32
      %v745 = vpop.permute.xlu0 %744
      %747 = vst.msk [vmem:[#allocation2] sm:$0xff] %vm302, %v745
      %v748 = vmul.f32 %v728, %v714
      %v749 = vmul.f32 %v735, %v652
      %751 = vrot.lane.b32.xlu0 %v749, 32
      %v752 = vpop.permute.xlu0 %751
      %v754 = vadd.f32 %v748, %v752
      %756 = vrot.lane.b32.xlu0 %v754, 96
      %v757 = vpop.permute.xlu0 %756
      %759 = vst.msk [vmem:[#allocation3] sm:$0xff] %vm302, %v757
      %761 = vrot.lane.b32.xlu0 %v730, 32
      %v762 = vpop.permute.xlu0 %761
      %s764 = scalar_lea.vmem %s272, %s653
      %765 = vst.msk [vmem:[%s764] sm:$0xff] %vm302, %v762
      %s766 = ssub.s32 4, %s18
      %s767 = sadd.s32 %s294, %s766
      %v768 = vld [vmem:[#allocation2] sm:$0xff]
      %v769 = vld [vmem:[#allocation3] sm:$0xff]
      %s770 = smul.u32 %s766, 8
      %s771 = scalar_lea.vmem %s249, %s770
      %v772 = vld [vmem:[%s771] sm:$0xff]
      %v774 = vsel %vm302, %v768, 0
      %776 = vmatpush.msra.mxu0 0.0
      %777 = vmatpush.msra.mxu0 0.0
      %778 = vmatpush.msra.mxu0 0.0
      %779 = vmatpush.msra.mxu0 0.0
      %780 = vmatpush.msra.mxu0 0.0
      %781 = vmatpush.msra.mxu0 0.0
      %782 = vmatpush.msra.mxu0 0.0
      %783 = vmatpush.msra.mxu0 0.0
      %784 = vmatpush.msra.mxu0 0.0
      %785 = vmatpush.msra.mxu0 0.0
      %786 = vmatpush.msra.mxu0 0.0
      %787 = vmatpush.msra.mxu0 0.0
      %788 = vmatpush.msra.mxu0 %v289
      %789 = vmatpush.msra.mxu0 %v288
      %790 = vmatpush.msra.mxu0 %v287
      %791 = vmatpush.msra.mxu0 %v286
      %792 = vmatmul.f32.gmra.mxu0 %v774
      %v793 = vpop.f32.mrf.mxu0
      %v794 = vadd.f32 0.0, %v793
      %795 = vdwg.mxu0
      %v796 = vadd.f32 %v772, %v794
      %v797 = vxor.u32 %v796, 2147483648
      %v798 = vmul.f32 %v797, 1.442695
      %v799 = vpow.pop %v798
      %v800 = vadd.f32 %v799, 1.0
      %v801 = vrcp.pop %v800
      %v802 = vmul.f32 %v800, %v801
      %v803 = vsub.f32 1.0, %v802
      %v804 = vmul.f32 %v801, %v803
      %v805 = vadd.f32 %v801, %v804
      %vm806 = vweird.f32 %v800
      %vm807 = vweird.f32 %v801
      %vm808 = vmor %vm806, %vm807
      %v809 = vsel %vm808, %v801, %v805
      %v810 = vand.u32 2147483647, %v800
      %vm811 = vcmp.eq.f32.partialorder %v810, 8.507059e+37
      %v812 = vand.u32 %v800, 2147483648
      %v813 = vor.u32 1.1754944e-38, %v812
      %v814 = vsel %vm811, %v813, %v809
      %v815 = vmul.f32 1.0, %v814
      %v816 = vtanh.pop %v796
      %818 = vrot.lane.b32.xlu0 %v769, 32
      %v819 = vpop.permute.xlu0 %818
      %v821 = vmul.f32 %v815, %v819
      %823 = vrot.lane.b32.xlu0 %v816, 64
      %v824 = vpop.permute.xlu0 %823
      %v826 = vmul.f32 %v815, %v824
      %828 = vrot.lane.b32.xlu0 %v826, 32
      %v829 = vpop.permute.xlu0 %828
      %v831 = vadd.f32 %v821, %v829
      %v832 = vtanh.pop %v831
      %834 = vrot.lane.b32.xlu0 %v832, 64
      %v835 = vpop.permute.xlu0 %834
      %v837 = vmul.f32 %v815, %v835
      %v838 = vstv %s767
      %vm839 = vcmp.lt.s32.totalorder %v838, %v285
      %v840 = vsel %vm839, 1, 0
      %v841 = vcvt.s32.f32 %v840
      %843 = vset.pattern.permute.xlu0 0
      %844 = vperm.xlu0 %843, %v841
      %v845 = vpop.permute.xlu0 %844
      %v847 = vmul.f32 %v845, %v837
      %v848 = vsub.f32 1.0, %v841
      %850 = vset.pattern.permute.xlu0 0
      %851 = vperm.xlu0 %850, %v848
      %v852 = vpop.permute.xlu0 %851
      %v854 = vmul.f32 %v852, %v768
      %856 = vrot.lane.b32.xlu0 %v854, 96
      %v857 = vpop.permute.xlu0 %856
      %v859 = vadd.f32 %v847, %v857
      %861 = vrot.lane.b32.xlu0 %v859, 32
      %v862 = vpop.permute.xlu0 %861
      %864 = vst.msk [vmem:[#allocation2] sm:$0xff] %vm302, %v862
      %v865 = vmul.f32 %v845, %v831
      %v866 = vmul.f32 %v852, %v769
      %868 = vrot.lane.b32.xlu0 %v866, 32
      %v869 = vpop.permute.xlu0 %868
      %v871 = vadd.f32 %v865, %v869
      %873 = vrot.lane.b32.xlu0 %v871, 96
      %v874 = vpop.permute.xlu0 %873
      %876 = vst.msk [vmem:[#allocation3] sm:$0xff] %vm302, %v874
      %878 = vrot.lane.b32.xlu0 %v847, 32
      %v879 = vpop.permute.xlu0 %878
      %s881 = scalar_lea.vmem %s272, %s770
      %882 = vst.msk [vmem:[%s881] sm:$0xff] %vm302, %v879
      %s883 = smul.u32 %s18, 4294967293
      %s884 = sadd.s32 %s883, 5
      %s885 = sadd.s32 %s294, %s884
      %v886 = vld [vmem:[#allocation2] sm:$0xff]
      %v887 = vld [vmem:[#allocation3] sm:$0xff]
      %s888 = smul.u32 %s884, 8
      %s889 = scalar_lea.vmem %s249, %s888
      %v890 = vld [vmem:[%s889] sm:$0xff]
      %v892 = vsel %vm302, %v886, 0
      %894 = vmatpush.msra.mxu0 0.0
      %895 = vmatpush.msra.mxu0 0.0
      %896 = vmatpush.msra.mxu0 0.0
      %897 = vmatpush.msra.mxu0 0.0
      %898 = vmatpush.msra.mxu0 0.0
      %899 = vmatpush.msra.mxu0 0.0
      %900 = vmatpush.msra.mxu0 0.0
      %901 = vmatpush.msra.mxu0 0.0
      %902 = vmatpush.msra.mxu0 0.0
      %903 = vmatpush.msra.mxu0 0.0
      %904 = vmatpush.msra.mxu0 0.0
      %905 = vmatpush.msra.mxu0 0.0
      %906 = vmatpush.msra.mxu0 %v289
      %907 = vmatpush.msra.mxu0 %v288
      %908 = vmatpush.msra.mxu0 %v287
      %909 = vmatpush.msra.mxu0 %v286
      %910 = vmatmul.f32.gmra.mxu0 %v892
      %v911 = vpop.f32.mrf.mxu0
      %v912 = vadd.f32 0.0, %v911
      %913 = vdwg.mxu0
      %v914 = vadd.f32 %v890, %v912
      %v915 = vxor.u32 %v914, 2147483648
      %v916 = vmul.f32 %v915, 1.442695
      %v917 = vpow.pop %v916
      %v918 = vadd.f32 %v917, 1.0
      %v919 = vrcp.pop %v918
      %v920 = vmul.f32 %v918, %v919
      %v921 = vsub.f32 1.0, %v920
      %v922 = vmul.f32 %v919, %v921
      %v923 = vadd.f32 %v919, %v922
      %vm924 = vweird.f32 %v918
      %vm925 = vweird.f32 %v919
      %vm926 = vmor %vm924, %vm925
      %v927 = vsel %vm926, %v919, %v923
      %v928 = vand.u32 2147483647, %v918
      %vm929 = vcmp.eq.f32.partialorder %v928, 8.507059e+37
      %v930 = vand.u32 %v918, 2147483648
      %v931 = vor.u32 1.1754944e-38, %v930
      %v932 = vsel %vm929, %v931, %v927
      %v933 = vmul.f32 1.0, %v932
      %v934 = vtanh.pop %v914
      %936 = vrot.lane.b32.xlu0 %v887, 32
      %v937 = vpop.permute.xlu0 %936
      %v939 = vmul.f32 %v933, %v937
      %941 = vrot.lane.b32.xlu0 %v934, 64
      %v942 = vpop.permute.xlu0 %941
      %v944 = vmul.f32 %v933, %v942
      %946 = vrot.lane.b32.xlu0 %v944, 32
      %v947 = vpop.permute.xlu0 %946
      %v949 = vadd.f32 %v939, %v947
      %v950 = vtanh.pop %v949
      %952 = vrot.lane.b32.xlu0 %v950, 64
      %v953 = vpop.permute.xlu0 %952
      %v955 = vmul.f32 %v933, %v953
      %v956 = vstv %s885
      %vm957 = vcmp.lt.s32.totalorder %v956, %v285
      %v958 = vsel %vm957, 1, 0
      %v959 = vcvt.s32.f32 %v958
      %961 = vset.pattern.permute.xlu0 0
      %962 = vperm.xlu0 %961, %v959
      %v963 = vpop.permute.xlu0 %962
      %v965 = vmul.f32 %v963, %v955
      %v966 = vsub.f32 1.0, %v959
      %968 = vset.pattern.permute.xlu0 0
      %969 = vperm.xlu0 %968, %v966
      %v970 = vpop.permute.xlu0 %969
      %v972 = vmul.f32 %v970, %v886
      %974 = vrot.lane.b32.xlu0 %v972, 96
      %v975 = vpop.permute.xlu0 %974
      %v977 = vadd.f32 %v965, %v975
      %979 = vrot.lane.b32.xlu0 %v977, 32
      %v980 = vpop.permute.xlu0 %979
      %982 = vst.msk [vmem:[#allocation2] sm:$0xff] %vm302, %v980
      %v983 = vmul.f32 %v963, %v949
      %v984 = vmul.f32 %v970, %v887
      %986 = vrot.lane.b32.xlu0 %v984, 32
      %v987 = vpop.permute.xlu0 %986
      %v989 = vadd.f32 %v983, %v987
      %991 = vrot.lane.b32.xlu0 %v989, 96
      %v992 = vpop.permute.xlu0 %991
      %994 = vst.msk [vmem:[#allocation3] sm:$0xff] %vm302, %v992
      %996 = vrot.lane.b32.xlu0 %v965, 32
      %v997 = vpop.permute.xlu0 %996
      %s999 = scalar_lea.vmem %s272, %s888
      %1000 = vst.msk [vmem:[%s999] sm:$0xff] %vm302, %v997
      %s1001 = smul.u32 %s18, 4294967291
      %s1002 = sadd.s32 %s1001, 6
      %s1003 = sadd.s32 %s294, %s1002
      %v1004 = vld [vmem:[#allocation2] sm:$0xff]
      %v1005 = vld [vmem:[#allocation3] sm:$0xff]
      %s1006 = smul.u32 %s1002, 8
      %s1007 = scalar_lea.vmem %s249, %s1006
      %v1008 = vld [vmem:[%s1007] sm:$0xff]
      %v1010 = vsel %vm302, %v1004, 0
      %1012 = vmatpush.msra.mxu0 0.0
      %1013 = vmatpush.msra.mxu0 0.0
      %1014 = vmatpush.msra.mxu0 0.0
      %1015 = vmatpush.msra.mxu0 0.0
      %1016 = vmatpush.msra.mxu0 0.0
      %1017 = vmatpush.msra.mxu0 0.0
      %1018 = vmatpush.msra.mxu0 0.0
      %1019 = vmatpush.msra.mxu0 0.0
      %1020 = vmatpush.msra.mxu0 0.0
      %1021 = vmatpush.msra.mxu0 0.0
      %1022 = vmatpush.msra.mxu0 0.0
      %1023 = vmatpush.msra.mxu0 0.0
      %1024 = vmatpush.msra.mxu0 %v289
      %1025 = vmatpush.msra.mxu0 %v288
      %1026 = vmatpush.msra.mxu0 %v287
      %1027 = vmatpush.msra.mxu0 %v286
      %1028 = vmatmul.f32.gmra.mxu0 %v1010
      %v1029 = vpop.f32.mrf.mxu0
      %v1030 = vadd.f32 0.0, %v1029
      %1031 = vdwg.mxu0
      %v1032 = vadd.f32 %v1008, %v1030
      %v1033 = vxor.u32 %v1032, 2147483648
      %v1034 = vmul.f32 %v1033, 1.442695
      %v1035 = vpow.pop %v1034
      %v1036 = vadd.f32 %v1035, 1.0
      %v1037 = vrcp.pop %v1036
      %v1038 = vmul.f32 %v1036, %v1037
      %v1039 = vsub.f32 1.0, %v1038
      %v1040 = vmul.f32 %v1037, %v1039
      %v1041 = vadd.f32 %v1037, %v1040
      %vm1042 = vweird.f32 %v1036
      %vm1043 = vweird.f32 %v1037
      %vm1044 = vmor %vm1042, %vm1043
      %v1045 = vsel %vm1044, %v1037, %v1041
      %v1046 = vand.u32 2147483647, %v1036
      %vm1047 = vcmp.eq.f32.partialorder %v1046, 8.507059e+37
      %v1048 = vand.u32 %v1036, 2147483648
      %v1049 = vor.u32 1.1754944e-38, %v1048
      %v1050 = vsel %vm1047, %v1049, %v1045
      %v1051 = vmul.f32 1.0, %v1050
      %v1052 = vtanh.pop %v1032
      %1054 = vrot.lane.b32.xlu0 %v1005, 32
      %v1055 = vpop.permute.xlu0 %1054
      %v1057 = vmul.f32 %v1051, %v1055
      %1059 = vrot.lane.b32.xlu0 %v1052, 64
      %v1060 = vpop.permute.xlu0 %1059
      %v1062 = vmul.f32 %v1051, %v1060
      %1064 = vrot.lane.b32.xlu0 %v1062, 32
      %v1065 = vpop.permute.xlu0 %1064
      %v1067 = vadd.f32 %v1057, %v1065
      %v1068 = vtanh.pop %v1067
      %1070 = vrot.lane.b32.xlu0 %v1068, 64
      %v1071 = vpop.permute.xlu0 %1070
      %v1073 = vmul.f32 %v1051, %v1071
      %v1074 = vstv %s1003
      %vm1075 = vcmp.lt.s32.totalorder %v1074, %v285
      %v1076 = vsel %vm1075, 1, 0
      %v1077 = vcvt.s32.f32 %v1076
      %1079 = vset.pattern.permute.xlu0 0
      %1080 = vperm.xlu0 %1079, %v1077
      %v1081 = vpop.permute.xlu0 %1080
      %v1083 = vmul.f32 %v1081, %v1073
      %v1084 = vsub.f32 1.0, %v1077
      %1086 = vset.pattern.permute.xlu0 0
      %1087 = vperm.xlu0 %1086, %v1084
      %v1088 = vpop.permute.xlu0 %1087
      %v1090 = vmul.f32 %v1088, %v1004
      %1092 = vrot.lane.b32.xlu0 %v1090, 96
      %v1093 = vpop.permute.xlu0 %1092
      %v1095 = vadd.f32 %v1083, %v1093
      %1097 = vrot.lane.b32.xlu0 %v1095, 32
      %v1098 = vpop.permute.xlu0 %1097
      %1100 = vst.msk [vmem:[#allocation2] sm:$0xff] %vm302, %v1098
      %v1101 = vmul.f32 %v1081, %v1067
      %v1102 = vmul.f32 %v1088, %v1005
      %1104 = vrot.lane.b32.xlu0 %v1102, 32
      %v1105 = vpop.permute.xlu0 %1104
      %v1107 = vadd.f32 %v1101, %v1105
      %1109 = vrot.lane.b32.xlu0 %v1107, 96
      %v1110 = vpop.permute.xlu0 %1109
      %1112 = vst.msk [vmem:[#allocation3] sm:$0xff] %vm302, %v1110
      %1114 = vrot.lane.b32.xlu0 %v1083, 32
      %v1115 = vpop.permute.xlu0 %1114
      %s1117 = scalar_lea.vmem %s272, %s1006
      %1118 = vst.msk [vmem:[%s1117] sm:$0xff] %vm302, %v1115
      %s1119 = smul.u32 %s18, 4294967289
      %s1120 = sadd.s32 %s1119, 7
      %s1121 = sadd.s32 %s294, %s1120
      %v1122 = vld [vmem:[#allocation2] sm:$0xff]
      %v1123 = vld [vmem:[#allocation3] sm:$0xff]
      %s1124 = smul.u32 %s1120, 8
      %s1125 = scalar_lea.vmem %s249, %s1124
      %v1126 = vld [vmem:[%s1125] sm:$0xff]
      %v1128 = vsel %vm302, %v1122, 0
      %1130 = vmatpush.msra.mxu0 0.0
      %1131 = vmatpush.msra.mxu0 0.0
      %1132 = vmatpush.msra.mxu0 0.0
      %1133 = vmatpush.msra.mxu0 0.0
      %1134 = vmatpush.msra.mxu0 0.0
      %1135 = vmatpush.msra.mxu0 0.0
      %1136 = vmatpush.msra.mxu0 0.0
      %1137 = vmatpush.msra.mxu0 0.0
      %1138 = vmatpush.msra.mxu0 0.0
      %1139 = vmatpush.msra.mxu0 0.0
      %1140 = vmatpush.msra.mxu0 0.0
      %1141 = vmatpush.msra.mxu0 0.0
      %1142 = vmatpush.msra.mxu0 %v289
      %1143 = vmatpush.msra.mxu0 %v288
      %1144 = vmatpush.msra.mxu0 %v287
      %1145 = vmatpush.msra.mxu0 %v286
      %1146 = vmatmul.f32.gmra.mxu0 %v1128
      %v1147 = vpop.f32.mrf.mxu0
      %v1148 = vadd.f32 0.0, %v1147
      %1149 = vdwg.mxu0
      %v1150 = vadd.f32 %v1126, %v1148
      %v1151 = vxor.u32 %v1150, 2147483648
      %v1152 = vmul.f32 %v1151, 1.442695
      %v1153 = vpow.pop %v1152
      %v1154 = vadd.f32 %v1153, 1.0
      %v1155 = vrcp.pop %v1154
      %v1156 = vmul.f32 %v1154, %v1155
      %v1157 = vsub.f32 1.0, %v1156
      %v1158 = vmul.f32 %v1155, %v1157
      %v1159 = vadd.f32 %v1155, %v1158
      %vm1160 = vweird.f32 %v1154
      %vm1161 = vweird.f32 %v1155
      %vm1162 = vmor %vm1160, %vm1161
      %v1163 = vsel %vm1162, %v1155, %v1159
      %v1164 = vand.u32 2147483647, %v1154
      %vm1165 = vcmp.eq.f32.partialorder %v1164, 8.507059e+37
      %v1166 = vand.u32 %v1154, 2147483648
      %v1167 = vor.u32 1.1754944e-38, %v1166
      %v1168 = vsel %vm1165, %v1167, %v1163
      %v1169 = vmul.f32 1.0, %v1168
      %v1170 = vtanh.pop %v1150
      %1172 = vrot.lane.b32.xlu0 %v1123, 32
      %v1173 = vpop.permute.xlu0 %1172
      %v1175 = vmul.f32 %v1169, %v1173
      %1177 = vrot.lane.b32.xlu0 %v1170, 64
      %v1178 = vpop.permute.xlu0 %1177
      %v1180 = vmul.f32 %v1169, %v1178
      %1182 = vrot.lane.b32.xlu0 %v1180, 32
      %v1183 = vpop.permute.xlu0 %1182
      %v1185 = vadd.f32 %v1175, %v1183
      %v1186 = vtanh.pop %v1185
      %1188 = vrot.lane.b32.xlu0 %v1186, 64
      %v1189 = vpop.permute.xlu0 %1188
      %v1191 = vmul.f32 %v1169, %v1189
      %v1192 = vstv %s1121
      %vm1193 = vcmp.lt.s32.totalorder %v1192, %v285
      %v1194 = vsel %vm1193, 1, 0
      %v1195 = vcvt.s32.f32 %v1194
      %1197 = vset.pattern.permute.xlu0 0
      %1198 = vperm.xlu0 %1197, %v1195
      %v1199 = vpop.permute.xlu0 %1198
      %v1201 = vmul.f32 %v1199, %v1191
      %v1202 = vsub.f32 1.0, %v1195
      %1204 = vset.pattern.permute.xlu0 0
      %1205 = vperm.xlu0 %1204, %v1202
      %v1206 = vpop.permute.xlu0 %1205
      %v1208 = vmul.f32 %v1206, %v1122
      %1210 = vrot.lane.b32.xlu0 %v1208, 96
      %v1211 = vpop.permute.xlu0 %1210
      %v1213 = vadd.f32 %v1201, %v1211
      %1215 = vrot.lane.b32.xlu0 %v1213, 32
      %v1216 = vpop.permute.xlu0 %1215
      %1218 = vst.msk [vmem:[#allocation2] sm:$0xff] %vm302, %v1216
      %v1219 = vmul.f32 %v1199, %v1185
      %v1220 = vmul.f32 %v1206, %v1123
      %1222 = vrot.lane.b32.xlu0 %v1220, 32
      %v1223 = vpop.permute.xlu0 %1222
      %v1225 = vadd.f32 %v1219, %v1223
      %1227 = vrot.lane.b32.xlu0 %v1225, 96
      %v1228 = vpop.permute.xlu0 %1227
      %1230 = vst.msk [vmem:[#allocation3] sm:$0xff] %vm302, %v1228
      %1232 = vrot.lane.b32.xlu0 %v1201, 32
      %v1233 = vpop.permute.xlu0 %1232
      %s1235 = scalar_lea.vmem %s272, %s1124
      %1236 = vst.msk [vmem:[%s1235] sm:$0xff] %vm302, %v1233
      %s1237 = smul.u32 %s19, 2
      %s1238 = ssub.s32 1, %s1237
      %s1239 = smul.u32 %s18, %s1238
      %s1240 = sadd.s32 %s19, %s1239
      %s1241 = smul.u32 8, %s1240
      %p1242 = scmp.lt.s32.totalorder %s18, 1
      %s1243 = scalar_select %p1242, %s18, 1
      %p1244 = scmp.lt.s32.totalorder %s1241, 15
      %s1245 = scalar_select %p1244, %s1241, 15
      %s1246 = smul.addr %s1243, 16
      %s1247 = sadd.s32 %s1245, %s1246
      %s1248 = smul.addr %s1247, 8
      %s1249 = scalar_lea.vmem %s3, %s1248
      // Predicated region
      $region37: #{rnn_encoder_forward.2} parent=31 // pred_check
        %p1250 = pneg %p137
      $region38: #{rnn_encoder_forward.2} parent=31 // pred_check_branch
        %1252 = sbr.rel (%p1250) target = $region40
      $region39: #{rnn_encoder_forward.2} parent=31 // pred_region
        %s1253 = smul.u32 %s19, 2
        %s1254 = ssub.s32 1, %s1253
        %s1255 = smul.u32 %s18, %s1254
        %s1256 = sadd.s32 %s19, %s1255
        %s1257 = smul.u32 8, %s1256
      $region40: #{rnn_encoder_forward.2} parent=31 // pred_fallthru
        _
    $region32: #{rnn_encoder_forward.2} parent=5 // pred_fallthru
      _
    %p1258 = scmp.le.s32.totalorder 2, %s9
    // Predicated region
    $region41: #{rnn_encoder_forward.2} parent=5 // pred_check
      %p1259 = pneg %p1258
    $region42: #{rnn_encoder_forward.2} parent=5 // pred_check_branch
      %1261 = sbr.rel (%p1259) target = $region44
    $region43: #{rnn_encoder_forward.2} parent=5 // pred_region
      %s1262 = ssub.s32 %s9, 2
      // Predicated region
      $region45: #{rnn_encoder_forward.2} parent=43 // pred_check
        %p1263 = pneg %p143
      $region46: #{rnn_encoder_forward.2} parent=43 // pred_check_branch
        %1265 = sbr.rel (%p1263) target = $region48
      $region47: #{rnn_encoder_forward.2} parent=43 // pred_region
        %s1266 = smul.u32 %s21, 2
        %s1267 = ssub.s32 1, %s1266
        %s1268 = smul.u32 %s20, %s1267
        %s1269 = sadd.s32 %s21, %s1268
        %s1270 = smul.u32 8, %s1269
        %p1271 = scmp.lt.s32.totalorder %s20, 1
        %s1272 = scalar_select %p1271, %s20, 1
        %p1273 = scmp.lt.s32.totalorder %s1270, 15
        %s1274 = scalar_select %p1273, %s1270, 15
        %s1275 = smul.addr %s1272, 16
        %s1276 = sadd.s32 %s1274, %s1275
        %s1277 = smul.addr %s1276, 8
        %s1278 = scalar_lea.vmem %s3, %s1277
      $region48: #{rnn_encoder_forward.2} parent=43 // pred_fallthru
        _
    $region44: #{rnn_encoder_forward.2} parent=5 // pred_fallthru
      _
  $region6: #{rnn_encoder_forward.2} parent=0 // loop_footer
    %s13 = sadd.s32 1, %s9
  $region7: #{rnn_encoder_forward.2} parent=0 // loop_footer_branch
    %8 = sbr.rel target = $region3
  $region8: #{rnn_encoder_forward.2} parent=0 // loop_exit
    _

</llo_original>
